<compile_context>
chip_gen: v7x
topology: tpu7x:2x2x1
jax: 0.10.0
libtpu: 0.0.40
codegen_flags: <defaults>
</compile_context>

<pallas_src>
import jax
import jax.numpy as jnp
from jax.experimental import pallas as pl
from jax.experimental.pallas import tpu as pltpu


def _round_up(x: int, m: int) -> int:
    return ((x + m - 1) // m) * m


def _vmem_capacity_bytes() -> int:
    try:
        return int(pltpu.get_tpu_info().vmem_capacity_bytes)
    except Exception:
        return 64 * 1024 * 1024  # conservative fallback: v7x per-TensorCore VMEM


def _compiler_params(vmem_needed: int, semantics, vmem_cap: int):
    kwargs = dict(dimension_semantics=semantics)
    # v5e's default scoped-VMEM limit is 16 MiB (32 MiB on v6e/v7x): raise it whenever
    # the working set could brush against that, capped just under physical capacity.
    if vmem_needed > 12 * 1024 * 1024:
        kwargs["vmem_limit_bytes"] = int(
            min(vmem_needed * 1.25, vmem_cap - 4 * 1024 * 1024))
    return pltpu.CompilerParams(**kwargs)


def _make_fused_kernel(grid_m: int, tm: int, m_true: int, inv_m: float, eps: float):
    """Single-pass kernel: matmul + one-pass stats + in-place rescale of the
    VMEM-resident (Cout, Mp) output."""
    ragged = (grid_m * tm) != m_true   # static: last (or only) tile has padded columns

    def kernel(x_ref, w_ref, g_ref, b_ref, o_ref, sum_ref, sumsq_ref):
        # x_ref:     (Cin, TM)    f32  activation tile (ragged boundary read is masked
        #                              by Pallas; pad columns are undefined -> masked below)
        # w_ref:     (Cout, Cin)  bf16 conv weight (constant index map)
        # g_ref/b_ref:(Cout, 1)   f32  BN gamma / beta
        # o_ref:     (Cout, Mp)   f32  full output, VMEM-resident across the grid
        # sum/sumsq: (Cout, 1)    f32  per-channel accumulators (scratch)
        t = pl.program_id(0)

        @pl.when(t == 0)
        def _init():
            sum_ref[...] = jnp.zeros_like(sum_ref)
            sumsq_ref[...] = jnp.zeros_like(sumsq_ref)

        # 1x1 conv == matmul on the MXU at native bf16 rate, f32 accumulation.
        x = x_ref[...].astype(jnp.bfloat16)
        y = jnp.dot(w_ref[...], x, preferred_element_type=jnp.float32)  # (Cout, TM)

        if ragged:
            # Zero the padded columns so the statistics (and the stored slab) are exact.
            col = jax.lax.broadcasted_iota(jnp.int32, (1, tm), 1) + t * tm
            y = jnp.where(col < m_true, y, 0.0)

        # One-pass batch statistics (f32, per output channel).
        sum_ref[...] += jnp.sum(y, axis=1, keepdims=True)
        sumsq_ref[...] += jnp.sum(y * y, axis=1, keepdims=True)

        if grid_m == 1:
            o_ref[...] = y
        else:
            off = pl.multiple_of(t * tm, tm)          # 128-aligned lane offset
            o_ref[:, pl.ds(off, tm)] = y

        @pl.when(t == grid_m - 1)
        def _finalize():
            mean = sum_ref[...] * inv_m                       # (Cout, 1)
            var = sumsq_ref[...] * inv_m - mean * mean        # biased batch variance
            inv_std = jax.lax.rsqrt(var + eps)
            scale = g_ref[...] * inv_std                      # folded affine
            shift = b_ref[...] - mean * scale
            o_ref[...] = o_ref[...] * scale + shift           # one mul + one add / elem

    return kernel


def _make_pass1_kernel(tm: int, m_true: int):
    """Two-pass fallback, pass 1: matmul tile -> HBM + per-tile partial sums."""
    ragged = (m_true % tm) != 0

    def kernel(x_ref, w_ref, y_ref, s_ref):
        x = x_ref[...].astype(jnp.bfloat16)
        y = jnp.dot(w_ref[...], x, preferred_element_type=jnp.float32)
        if ragged:
            col = (jax.lax.broadcasted_iota(jnp.int32, (1, tm), 1)
                   + pl.program_id(0) * tm)
            y = jnp.where(col < m_true, y, 0.0)
        s_ref[:, 0:1] = jnp.sum(y, axis=1, keepdims=True)
        s_ref[:, 1:2] = jnp.sum(y * y, axis=1, keepdims=True)
        y_ref[...] = y

    return kernel


def _rescale_kernel(y_ref, sc_ref, sh_ref, o_ref):
    """Two-pass fallback, pass 2: broadcasted y*scale + shift."""
    o_ref[...] = y_ref[...] * sc_ref[...] + sh_ref[...]


def conv2d_batchnorm(x_nchw, weight, gamma, beta, *, eps=1e-3, tm_max=1024):
    """x_nchw: (N, Cin, H, W); weight: (Cout, Cin, 1, 1); gamma/beta: (Cout,)."""
    N, Cin, H, W = x_nchw.shape
    Cout = weight.shape[0]
    M = N * H * W

    # NCHW -> (Cin, M). For N == 1 (the module's shape) this is a pure reshape.
    x2d = jnp.transpose(x_nchw, (1, 0, 2, 3)).reshape(Cin, M).astype(jnp.float32)
    w2d = weight.reshape(Cout, Cin).astype(jnp.bfloat16)       # (Cout, Cin) bf16
    g2d = gamma.reshape(Cout, 1).astype(jnp.float32)
    b2d = beta.reshape(Cout, 1).astype(jnp.float32)

    vmem_cap = _vmem_capacity_bytes()

    # Lane-dense internal tile width (multiple of 128); x stays unpadded in HBM and the
    # ragged tail is masked in-kernel, so no extra HBM pass over x is ever made.
    tm = min(_round_up(M, 128), _round_up(tm_max, 128))
    grid_m = pl.cdiv(M, tm)
    mp = grid_m * tm

    # Single-pass working set (double-buffer-conservative for the resident output).
    vmem_single = (2 * Cin * tm * 4        # x tiles (f32, double buffered)
                   + 2 * Cout * Cin * 2    # weight (bf16)
                   + 2 * Cout * mp * 4     # VMEM-resident output (conservative x2)
                   + 4 * Cout * 128 * 4)   # scratch + small operands
    use_single_pass = vmem_single <= int(0.7 * vmem_cap)

    if use_single_pass:
        kernel = _make_fused_kernel(grid_m, tm, M, 1.0 / M, eps)
        cost = pl.CostEstimate(
            flops=2 * M * Cin * Cout + 8 * M * Cout,
            transcendentals=Cout,
            bytes_accessed=Cin * M * 4 + Cout * Cin * 2 + 2 * Cout * 4 + Cout * mp * 4,
        )
        out2d = pl.pallas_call(
            kernel,
            out_shape=jax.ShapeDtypeStruct((Cout, mp), jnp.float32),
            grid=(grid_m,),
            in_specs=[
                pl.BlockSpec((Cin, tm), lambda t: (0, t)),     # streamed activation tile
                pl.BlockSpec((Cout, Cin), lambda t: (0, 0)),   # weight, fetched once
                pl.BlockSpec((Cout, 1), lambda t: (0, 0)),
                pl.BlockSpec((Cout, 1), lambda t: (0, 0)),
            ],
            out_specs=pl.BlockSpec((Cout, mp), lambda t: (0, 0)),  # VMEM-resident output
            scratch_shapes=[
                pltpu.VMEM((Cout, 1), jnp.float32),   # sum(y)
                pltpu.VMEM((Cout, 1), jnp.float32),   # sum(y*y)
            ],
            compiler_params=_compiler_params(vmem_single, ("arbitrary",), vmem_cap),
            cost_estimate=cost,
        )(x2d, w2d, g2d, b2d)
        if mp != M:
            out2d = out2d[:, :M]
    else:
        # Two-pass fallback (large M, e.g. v7x's 64 MiB/TC budget): stream raw y to HBM
        # with per-tile partial stats, fold the affine in XLA, rescale in a second call.
        # Both passes are "parallel" -> v7x's two TensorCores both engage.
        p1 = _make_pass1_kernel(tm, M)
        vmem_p1 = (2 * Cin * tm * 4 + 2 * Cout * Cin * 2
                   + 2 * Cout * tm * 4 + 4 * Cout * 2 * 4)
        y2d, part = pl.pallas_call(
            p1,
            out_shape=(jax.ShapeDtypeStruct((Cout, M), jnp.float32),
                       jax.ShapeDtypeStruct((grid_m * Cout, 2), jnp.float32)),
            grid=(grid_m,),
            in_specs=[
                pl.BlockSpec((Cin, tm), lambda t: (0, t)),
                pl.BlockSpec((Cout, Cin), lambda t: (0, 0)),
            ],
            out_specs=(pl.BlockSpec((Cout, tm), lambda t: (0, t)),
                       pl.BlockSpec((Cout, 2), lambda t: (t, 0))),
            compiler_params=_compiler_params(vmem_p1, ("parallel",), vmem_cap),
        )(x2d, w2d)

        s = part.reshape(grid_m, Cout, 2).sum(axis=0)          # (Cout, 2)
        mean = s[:, 0:1] * (1.0 / M)
        var = s[:, 1:2] * (1.0 / M) - mean * mean
        scale = g2d * jax.lax.rsqrt(var + eps)
        shift = b2d - mean * scale

        vmem_p2 = 4 * Cout * tm * 4 + 4 * Cout * 4
        out2d = pl.pallas_call(
            _rescale_kernel,
            out_shape=jax.ShapeDtypeStruct((Cout, M), jnp.float32),
            grid=(grid_m,),
            in_specs=[
                pl.BlockSpec((Cout, tm), lambda t: (0, t)),
                pl.BlockSpec((Cout, 1), lambda t: (0, 0)),
                pl.BlockSpec((Cout, 1), lambda t: (0, 0)),
            ],
            out_specs=pl.BlockSpec((Cout, tm), lambda t: (0, t)),
            compiler_params=_compiler_params(vmem_p2, ("parallel",), vmem_cap),
        )(y2d, scale, shift)

    # (Cout, M) -> NCHW. For N == 1 this is again a pure reshape (no data movement).
    return jnp.transpose(out2d.reshape(Cout, N, H, W), (1, 0, 2, 3))


def _reference(x_nchw, weight, gamma, beta, *, matmul_dtype=jnp.float32, eps=1e-3):
    """Plain-JAX reference (NHWC matmul + training-mode BN)."""
    N, Cin, H, W = x_nchw.shape
    Cout = weight.shape[0]
    x2d = jnp.transpose(x_nchw, (0, 2, 3, 1)).reshape(-1, Cin)
    w2d = weight.reshape(Cout, Cin)
    y = jnp.dot(x2d.astype(matmul_dtype), w2d.T.astype(matmul_dtype),
                preferred_element_type=jnp.float32)
    mean = jnp.mean(y, axis=0, keepdims=True)
    var = jnp.mean((y - mean) ** 2, axis=0, keepdims=True)
    out = (y - mean) * jax.lax.rsqrt(var + eps) * gamma[None, :] + beta[None, :]
    return jnp.transpose(out.reshape(N, H, W, Cout), (0, 3, 1, 2))


if __name__ == "__main__":
    key = jax.random.PRNGKey(0)
    kx, kw, kg, kb = jax.random.split(key, 4)

    # Shapes dictated by the module: x302 is (1, 768, 14, 14), Conv2d(768 -> 128, 1x1).
    N, Cin, H, W = 1, 768, 14, 14
    Cout = 128

    x = jax.random.normal(kx, (N, Cin, H, W), dtype=jnp.float32)
    bound = 1.0 / (Cin ** 0.5)
    weight = jax.random.uniform(kw, (Cout, Cin, 1, 1), minval=-bound, maxval=bound,
                                dtype=jnp.float32)
    gamma = jax.random.uniform(kg, (Cout,), minval=0.5, maxval=1.5, dtype=jnp.float32)
    beta = 0.1 * jax.random.normal(kb, (Cout,), dtype=jnp.float32)

    out = jax.block_until_ready(conv2d_batchnorm(x, weight, gamma, beta))
    assert out.shape == (N, Cout, H, W)

    # Tight check against a reference using the same bf16 operand rounding...
    ref_bf16 = _reference(x, weight, gamma, beta, matmul_dtype=jnp.bfloat16)
    assert jnp.allclose(out, ref_bf16, atol=3e-3, rtol=3e-3), \
        float(jnp.max(jnp.abs(out - ref_bf16)))
    # ...and a loose semantic sanity check against the full-f32 reference.
    ref_f32 = _reference(x, weight, gamma, beta, matmul_dtype=jnp.float32)
    assert jnp.allclose(out, ref_f32, atol=5e-2, rtol=5e-2), \
        float(jnp.max(jnp.abs(out - ref_f32)))

    print("KERNEL_OK")
</pallas_src>

<mosaic_0001>
module attributes {stable_mosaic.version = 11 : i64} {
  func.func @kernel(%arg0: i32, %arg1: memref<768x256xf32, #tpu.memory_space<vmem>>, %arg2: memref<128x768xbf16, #tpu.memory_space<vmem>>, %arg3: memref<128x1xf32, #tpu.memory_space<vmem>>, %arg4: memref<128x1xf32, #tpu.memory_space<vmem>>, %arg5: memref<128x256xf32, #tpu.memory_space<vmem>>, %arg6: memref<128x1xf32, #tpu.memory_space<vmem>>, %arg7: memref<128x1xf32, #tpu.memory_space<vmem>>) attributes {dimension_semantics = [#tpu.dimension_semantics<arbitrary>], iteration_bounds = array<i64: 1>, scalar_prefetch = 0 : i64, scratch_operands = 2 : i64, tpu.core_type = #tpu.core_type<tc>, window_params = [{transform_indices = @transform_0, window_bounds = array<i64: 768, 256>}, {pipeline_mode = #tpu.pipeline_mode<synchronous>, transform_indices = @transform_1, window_bounds = array<i64: 128, 768>}, {pipeline_mode = #tpu.pipeline_mode<synchronous>, transform_indices = @transform_2, window_bounds = array<i64: 128, 1>}, {pipeline_mode = #tpu.pipeline_mode<synchronous>, transform_indices = @transform_3, window_bounds = array<i64: 128, 1>}, {pipeline_mode = #tpu.pipeline_mode<synchronous>, transform_indices = @transform_4, window_bounds = array<i64: 128, 256>}]} {
    %c0_i32 = arith.constant 0 : i32
    %0 = arith.cmpi eq, %arg0, %c0_i32 : i32
    %1 = arith.extui %0 : i1 to i32
    %c0_i32_0 = arith.constant 0 : i32
    %2 = arith.cmpi ne, %1, %c0_i32_0 : i32
    scf.if %2 {
      %cst_19 = arith.constant 0.000000e+00 : f32
      %32 = vector.broadcast %cst_19 : f32 to vector<128x1xf32>
      %c0_20 = arith.constant 0 : index
      %c0_21 = arith.constant 0 : index
      %33 = vector.load %arg6[%c0_20, %c0_21] : memref<128x1xf32, #tpu.memory_space<vmem>>, vector<128x1xf32>
      tpu.vector_store %arg6[%c0_20, %c0_21], %32 {strides = array<i32>} : memref<128x1xf32, #tpu.memory_space<vmem>>, vector<128x1xf32>,
      %cst_22 = arith.constant 0.000000e+00 : f32
      %34 = vector.broadcast %cst_22 : f32 to vector<128x1xf32>
      %c0_23 = arith.constant 0 : index
      %c0_24 = arith.constant 0 : index
      %35 = vector.load %arg7[%c0_23, %c0_24] : memref<128x1xf32, #tpu.memory_space<vmem>>, vector<128x1xf32>
      tpu.vector_store %arg7[%c0_23, %c0_24], %34 {strides = array<i32>} : memref<128x1xf32, #tpu.memory_space<vmem>>, vector<128x1xf32>,
    } else {
    }
    %c0 = arith.constant 0 : index
    %c0_1 = arith.constant 0 : index
    %3 = vector.load %arg1[%c0, %c0_1] : memref<768x256xf32, #tpu.memory_space<vmem>>, vector<768x256xf32>
    %4 = arith.truncf %3 : vector<768x256xf32> to vector<768x256xbf16>
    %c0_2 = arith.constant 0 : index
    %c0_3 = arith.constant 0 : index
    %5 = vector.load %arg2[%c0_2, %c0_3] : memref<128x768xbf16, #tpu.memory_space<vmem>>, vector<128x768xbf16>
    %cst = arith.constant dense<0.000000e+00> : vector<128x256xf32>
    %6 = tpu.matmul %5, %4, %cst {dimension_numbers = #tpu.dot_dimension_numbers<[1], [0], [0], [1], [0, 0, 1, 1], [], []>} : vector<128x768xbf16>, vector<768x256xbf16>, vector<128x256xf32> -> vector<128x256xf32>
    %7 = tpu.iota {dimensions = array<i32: 1>} : vector<1x256xi32>
    %c256_i32 = arith.constant 256 : i32
    %8 = arith.muli %arg0, %c256_i32 : i32
    %9 = vector.broadcast %8 : i32 to vector<1x256xi32>
    %10 = arith.addi %7, %9 : vector<1x256xi32>
    %c196_i32 = arith.constant 196 : i32
    %11 = vector.broadcast %c196_i32 : i32 to vector<1x256xi32>
    %12 = arith.cmpi slt, %10, %11 : vector<1x256xi32>
    %cst_4 = arith.constant 0.000000e+00 : f32
    %13 = vector.shape_cast %12 : vector<1x256xi1> to vector<1x256xi1>
    %14 = vector.broadcast %13 : vector<1x256xi1> to vector<128x256xi1>
    %15 = vector.broadcast %cst_4 : f32 to vector<128x256xf32>
    %16 = arith.select %14, %6, %15 : vector<128x256xi1>, vector<128x256xf32>
    %c0_5 = arith.constant 0 : index
    %c0_6 = arith.constant 0 : index
    %17 = vector.load %arg6[%c0_5, %c0_6] : memref<128x1xf32, #tpu.memory_space<vmem>>, vector<128x1xf32>
    %cst_7 = arith.constant dense<0.000000e+00> : vector<128xf32>
    %18 = vector.multi_reduction <add>, %16, %cst_7 [1] : vector<128x256xf32> to vector<128xf32>
    %19 = vector.shape_cast %18 : vector<128xf32> to vector<128x1xf32>
    %20 = arith.addf %17, %19 : vector<128x1xf32>
    %c0_8 = arith.constant 0 : index
    %c0_9 = arith.constant 0 : index
    %21 = vector.load %arg6[%c0_8, %c0_9] : memref<128x1xf32, #tpu.memory_space<vmem>>, vector<128x1xf32>
    tpu.vector_store %arg6[%c0_8, %c0_9], %20 {strides = array<i32>} : memref<128x1xf32, #tpu.memory_space<vmem>>, vector<128x1xf32>,
    %c0_10 = arith.constant 0 : index
    %c0_11 = arith.constant 0 : index
    %22 = vector.load %arg7[%c0_10, %c0_11] : memref<128x1xf32, #tpu.memory_space<vmem>>, vector<128x1xf32>
    %23 = arith.mulf %16, %16 : vector<128x256xf32>
    %cst_12 = arith.constant dense<0.000000e+00> : vector<128xf32>
    %24 = vector.multi_reduction <add>, %23, %cst_12 [1] : vector<128x256xf32> to vector<128xf32>
    %25 = vector.shape_cast %24 : vector<128xf32> to vector<128x1xf32>
    %26 = arith.addf %22, %25 : vector<128x1xf32>
    %c0_13 = arith.constant 0 : index
    %c0_14 = arith.constant 0 : index
    %27 = vector.load %arg7[%c0_13, %c0_14] : memref<128x1xf32, #tpu.memory_space<vmem>>, vector<128x1xf32>
    tpu.vector_store %arg7[%c0_13, %c0_14], %26 {strides = array<i32>} : memref<128x1xf32, #tpu.memory_space<vmem>>, vector<128x1xf32>,
    %c0_15 = arith.constant 0 : index
    %c0_16 = arith.constant 0 : index
    %28 = vector.load %arg5[%c0_15, %c0_16] : memref<128x256xf32, #tpu.memory_space<vmem>>, vector<128x256xf32>
    tpu.vector_store %arg5[%c0_15, %c0_16], %16 {strides = array<i32>} : memref<128x256xf32, #tpu.memory_space<vmem>>, vector<128x256xf32>,
    %c0_i32_17 = arith.constant 0 : i32
    %29 = arith.cmpi eq, %arg0, %c0_i32_17 : i32
    %30 = arith.extui %29 : i1 to i32
    %c0_i32_18 = arith.constant 0 : i32
    %31 = arith.cmpi ne, %30, %c0_i32_18 : i32
    scf.if %31 {
      %c0_19 = arith.constant 0 : index
      %c0_20 = arith.constant 0 : index
      %32 = vector.load %arg6[%c0_19, %c0_20] : memref<128x1xf32, #tpu.memory_space<vmem>>, vector<128x1xf32>
      %cst_21 = arith.constant 0.00510204071 : f32
      %33 = vector.broadcast %cst_21 : f32 to vector<128x1xf32>
      %34 = arith.mulf %32, %33 : vector<128x1xf32>
      %c0_22 = arith.constant 0 : index
      %c0_23 = arith.constant 0 : index
      %35 = vector.load %arg7[%c0_22, %c0_23] : memref<128x1xf32, #tpu.memory_space<vmem>>, vector<128x1xf32>
      %cst_24 = arith.constant 0.00510204071 : f32
      %36 = vector.broadcast %cst_24 : f32 to vector<128x1xf32>
      %37 = arith.mulf %35, %36 : vector<128x1xf32>
      %38 = arith.mulf %34, %34 : vector<128x1xf32>
      %39 = arith.subf %37, %38 : vector<128x1xf32>
      %cst_25 = arith.constant 1.000000e-03 : f32
      %40 = vector.broadcast %cst_25 : f32 to vector<128x1xf32>
      %41 = arith.addf %39, %40 : vector<128x1xf32>
      %42 = math.rsqrt %41 : vector<128x1xf32>
      %c0_26 = arith.constant 0 : index
      %c0_27 = arith.constant 0 : index
      %43 = vector.load %arg3[%c0_26, %c0_27] : memref<128x1xf32, #tpu.memory_space<vmem>>, vector<128x1xf32>
      %44 = arith.mulf %43, %42 : vector<128x1xf32>
      %c0_28 = arith.constant 0 : index
      %c0_29 = arith.constant 0 : index
      %45 = vector.load %arg4[%c0_28, %c0_29] : memref<128x1xf32, #tpu.memory_space<vmem>>, vector<128x1xf32>
      %46 = arith.mulf %34, %44 : vector<128x1xf32>
      %47 = arith.subf %45, %46 : vector<128x1xf32>
      %c0_30 = arith.constant 0 : index
      %c0_31 = arith.constant 0 : index
      %48 = vector.load %arg5[%c0_30, %c0_31] : memref<128x256xf32, #tpu.memory_space<vmem>>, vector<128x256xf32>
      %49 = vector.broadcast %44 : vector<128x1xf32> to vector<128x256xf32>
      %50 = arith.mulf %48, %49 : vector<128x256xf32>
      %51 = vector.broadcast %47 : vector<128x1xf32> to vector<128x256xf32>
      %52 = arith.addf %50, %51 : vector<128x256xf32>
      %c0_32 = arith.constant 0 : index
      %c0_33 = arith.constant 0 : index
      %53 = vector.load %arg5[%c0_32, %c0_33] : memref<128x256xf32, #tpu.memory_space<vmem>>, vector<128x256xf32>
      tpu.vector_store %arg5[%c0_32, %c0_33], %52 {strides = array<i32>} : memref<128x256xf32, #tpu.memory_space<vmem>>, vector<128x256xf32>,
    } else {
    }
    return
  }
  func.func @transform_0(%arg0: i32) -> (i32, i32) {
    %c0_i32 = arith.constant 0 : i32
    %c0_i32_0 = arith.constant 0 : i32
    return %c0_i32, %arg0 : i32, i32
  }
  func.func @transform_1(%arg0: i32) -> (i32, i32) {
    %c0_i32 = arith.constant 0 : i32
    %c0_i32_0 = arith.constant 0 : i32
    %c0_i32_1 = arith.constant 0 : i32
    return %c0_i32, %c0_i32_0 : i32, i32
  }
  func.func @transform_2(%arg0: i32) -> (i32, i32) {
    %c0_i32 = arith.constant 0 : i32
    %c0_i32_0 = arith.constant 0 : i32
    %c0_i32_1 = arith.constant 0 : i32
    return %c0_i32, %c0_i32_0 : i32, i32
  }
  func.func @transform_3(%arg0: i32) -> (i32, i32) {
    %c0_i32 = arith.constant 0 : i32
    %c0_i32_0 = arith.constant 0 : i32
    %c0_i32_1 = arith.constant 0 : i32
    return %c0_i32, %c0_i32_0 : i32, i32
  }
  func.func @transform_4(%arg0: i32) -> (i32, i32) {
    %c0_i32 = arith.constant 0 : i32
    %c0_i32_0 = arith.constant 0 : i32
    %c0_i32_1 = arith.constant 0 : i32
    return %c0_i32, %c0_i32_0 : i32, i32
  }
}

</mosaic_0001>

<llo_original>
// kernel: tpu_custom_call.1
$region0: #{tpu_custom_call.1}
  #allocation0 [shape = 'u32[]', space=smem, size = 0x4, offset = 0x4, fixed_abs, tag = 'smem constant byte address 0x4 - core index']
  #allocation1 [shape = 'u32[144,128]{1,0:T(1,128)}', space=vmem, size = 0x12000, scoped, tag = 'internal scratch']
  #allocation2 [shape = 'f32[128,1]{1,0:T(8,128)}', space=vmem, size = 0x10000, scoped, tag = 'scratch operand']
  #allocation3 [shape = 'f32[128,1]{1,0:T(8,128)}', space=vmem, size = 0x10000, scoped, tag = 'scratch operand']
  %s0 = inlined_call_operand.vmem [shape: f32[768,196], index: 0, kind: input, shape index: {}]
  %s1 = inlined_call_operand.vmem [shape: bf16[128,768], index: 1, kind: input, shape index: {}]
  %s2 = inlined_call_operand.vmem [shape: f32[128,1], index: 2, kind: input, shape index: {}]
  %s3 = inlined_call_operand.vmem [shape: f32[128,1], index: 3, kind: input, shape index: {}]
  %s4 = inlined_call_operand.hbm [shape: f32[128,256], index: 4, kind: output, shape index: {}]
  %s5 = sld [smem:[#allocation0]]
  $region34: #{tpu_custom_call.1} parent=0
    _
  %s7 = ssub.s32 1, %s5
  %s8 = scalar_select 0, %s7, %s5
  $region1: #{tpu_custom_call.1} parent=0
    #allocation4 [shape = 'u8[131072]{0}', space=vmem, size = 0x20000, scoped, tag = 'output window, operand 0, single buffered']
    #allocation5 [shape = 's32[1]{0}', space=sflag, size = 0x4, scoped, tag = 'scoped memory for tpu_custom_call.1']
    %9 = vsyncpa [#allocation5], 0
    // Predicated region
    $region2: #{tpu_custom_call.1} parent=1 // pred_check
      _
    $region3: #{tpu_custom_call.1} parent=1 // pred_check_branch
      %11 = sbr.rel (0) target = $region5
    $region4: #{tpu_custom_call.1} parent=1 // pred_region
      _
    $region5: #{tpu_custom_call.1} parent=1 // pred_fallthru
      _
    // Predicated region
    $region6: #{tpu_custom_call.1} parent=1 // pred_check
      _
    $region7: #{tpu_custom_call.1} parent=1 // pred_check_branch
      %13 = sbr.rel (0) target = $region9
    $region8: #{tpu_custom_call.1} parent=1 // pred_region
      _
    $region9: #{tpu_custom_call.1} parent=1 // pred_fallthru
      _
    // Predicated region
    $region10: #{tpu_custom_call.1} parent=1 // pred_check
      _
    $region11: #{tpu_custom_call.1} parent=1 // pred_check_branch
      %15 = sbr.rel (0) target = $region13
    $region12: #{tpu_custom_call.1} parent=1 // pred_region
      _
    $region13: #{tpu_custom_call.1} parent=1 // pred_fallthru
      _
    // Predicated region
    $region14: #{tpu_custom_call.1} parent=1 // pred_check
      _
    $region15: #{tpu_custom_call.1} parent=1 // pred_check_branch
      %17 = sbr.rel (0) target = $region17
    $region16: #{tpu_custom_call.1} parent=1 // pred_region
      _
    $region17: #{tpu_custom_call.1} parent=1 // pred_fallthru
      _
    %p18 = scmp.eq.s32.totalorder 0, 0
    // Predicated region
    $region18: #{tpu_custom_call.1} parent=1 // pred_check
      %p19 = pneg %p18
    $region19: #{tpu_custom_call.1} parent=1 // pred_check_branch
      %21 = sbr.rel (%p19) target = $region21
    $region20: #{tpu_custom_call.1} parent=1 // pred_region
      %vm22 = vcmask 7168
      %23 = vst.msk [vmem:[#allocation2] sm:$0xff] %vm22, 0.0
      %24 = vst.msk [vmem:[#allocation2 + $0x8] sm:$0xff] %vm22, 0.0
      %25 = vst.msk [vmem:[#allocation2 + $0x10] sm:$0xff] %vm22, 0.0
      %26 = vst.msk [vmem:[#allocation2 + $0x18] sm:$0xff] %vm22, 0.0
      %27 = vst.msk [vmem:[#allocation2 + $0x20] sm:$0xff] %vm22, 0.0
      %28 = vst.msk [vmem:[#allocation2 + $0x28] sm:$0xff] %vm22, 0.0
      %29 = vst.msk [vmem:[#allocation2 + $0x30] sm:$0xff] %vm22, 0.0
      %30 = vst.msk [vmem:[#allocation2 + $0x38] sm:$0xff] %vm22, 0.0
      %31 = vst.msk [vmem:[#allocation2 + $0x40] sm:$0xff] %vm22, 0.0
      %32 = vst.msk [vmem:[#allocation2 + $0x48] sm:$0xff] %vm22, 0.0
      %33 = vst.msk [vmem:[#allocation2 + $0x50] sm:$0xff] %vm22, 0.0
      %34 = vst.msk [vmem:[#allocation2 + $0x58] sm:$0xff] %vm22, 0.0
      %35 = vst.msk [vmem:[#allocation2 + $0x60] sm:$0xff] %vm22, 0.0
      %36 = vst.msk [vmem:[#allocation2 + $0x68] sm:$0xff] %vm22, 0.0
      %37 = vst.msk [vmem:[#allocation2 + $0x70] sm:$0xff] %vm22, 0.0
      %38 = vst.msk [vmem:[#allocation2 + $0x78] sm:$0xff] %vm22, 0.0
      %39 = vst.msk [vmem:[#allocation3] sm:$0xff] %vm22, 0.0
      %40 = vst.msk [vmem:[#allocation3 + $0x8] sm:$0xff] %vm22, 0.0
      %41 = vst.msk [vmem:[#allocation3 + $0x10] sm:$0xff] %vm22, 0.0
      %42 = vst.msk [vmem:[#allocation3 + $0x18] sm:$0xff] %vm22, 0.0
      %43 = vst.msk [vmem:[#allocation3 + $0x20] sm:$0xff] %vm22, 0.0
      %44 = vst.msk [vmem:[#allocation3 + $0x28] sm:$0xff] %vm22, 0.0
      %45 = vst.msk [vmem:[#allocation3 + $0x30] sm:$0xff] %vm22, 0.0
      %46 = vst.msk [vmem:[#allocation3 + $0x38] sm:$0xff] %vm22, 0.0
      %47 = vst.msk [vmem:[#allocation3 + $0x40] sm:$0xff] %vm22, 0.0
      %48 = vst.msk [vmem:[#allocation3 + $0x48] sm:$0xff] %vm22, 0.0
      %49 = vst.msk [vmem:[#allocation3 + $0x50] sm:$0xff] %vm22, 0.0
      %50 = vst.msk [vmem:[#allocation3 + $0x58] sm:$0xff] %vm22, 0.0
      %51 = vst.msk [vmem:[#allocation3 + $0x60] sm:$0xff] %vm22, 0.0
      %52 = vst.msk [vmem:[#allocation3 + $0x68] sm:$0xff] %vm22, 0.0
      %53 = vst.msk [vmem:[#allocation3 + $0x70] sm:$0xff] %vm22, 0.0
      %54 = vst.msk [vmem:[#allocation3 + $0x78] sm:$0xff] %vm22, 0.0
    $region21: #{tpu_custom_call.1} parent=1 // pred_fallthru
      _
    %v55 = vld [vmem:[%s0] sm:$0xff]
    %v56 = vld [vmem:[%s0 + $0x8] sm:$0xff]
    %v57 = vld [vmem:[%s0 + $0x10] sm:$0xff]
    %v58 = vld [vmem:[%s0 + $0x18] sm:$0xff]
    %v59 = vld [vmem:[%s0 + $0x20] sm:$0xff]
    %v60 = vld [vmem:[%s0 + $0x28] sm:$0xff]
    %v61 = vld [vmem:[%s0 + $0x30] sm:$0xff]
    %v62 = vld [vmem:[%s0 + $0x38] sm:$0xff]
    %v63 = vld [vmem:[%s0 + $0x40] sm:$0xff]
    %v64 = vld [vmem:[%s0 + $0x48] sm:$0xff]
    %v65 = vld [vmem:[%s0 + $0x50] sm:$0xff]
    %v66 = vld [vmem:[%s0 + $0x58] sm:$0xff]
    %v67 = vld [vmem:[%s0 + $0x60] sm:$0xff]
    %v68 = vld [vmem:[%s0 + $0x68] sm:$0xff]
    %v69 = vld [vmem:[%s0 + $0x70] sm:$0xff]
    %v70 = vld [vmem:[%s0 + $0x78] sm:$0xff]
    %v71 = vld [vmem:[%s0 + $0x80] sm:$0xff]
    %v72 = vld [vmem:[%s0 + $0x88] sm:$0xff]
    %v73 = vld [vmem:[%s0 + $0x90] sm:$0xff]
    %v74 = vld [vmem:[%s0 + $0x98] sm:$0xff]
    %v75 = vld [vmem:[%s0 + $0xa0] sm:$0xff]
    %v76 = vld [vmem:[%s0 + $0xa8] sm:$0xff]
    %v77 = vld [vmem:[%s0 + $0xb0] sm:$0xff]
    %v78 = vld [vmem:[%s0 + $0xb8] sm:$0xff]
    %v79 = vld [vmem:[%s0 + $0xc0] sm:$0xff]
    %v80 = vld [vmem:[%s0 + $0xc8] sm:$0xff]
    %v81 = vld [vmem:[%s0 + $0xd0] sm:$0xff]
    %v82 = vld [vmem:[%s0 + $0xd8] sm:$0xff]
    %v83 = vld [vmem:[%s0 + $0xe0] sm:$0xff]
    %v84 = vld [vmem:[%s0 + $0xe8] sm:$0xff]
    %v85 = vld [vmem:[%s0 + $0xf0] sm:$0xff]
    %v86 = vld [vmem:[%s0 + $0xf8] sm:$0xff]
    %v87 = vld [vmem:[%s0 + $0x100] sm:$0xff]
    %v88 = vld [vmem:[%s0 + $0x108] sm:$0xff]
    %v89 = vld [vmem:[%s0 + $0x110] sm:$0xff]
    %v90 = vld [vmem:[%s0 + $0x118] sm:$0xff]
    %v91 = vld [vmem:[%s0 + $0x120] sm:$0xff]
    %v92 = vld [vmem:[%s0 + $0x128] sm:$0xff]
    %v93 = vld [vmem:[%s0 + $0x130] sm:$0xff]
    %v94 = vld [vmem:[%s0 + $0x138] sm:$0xff]
    %v95 = vld [vmem:[%s0 + $0x140] sm:$0xff]
    %v96 = vld [vmem:[%s0 + $0x148] sm:$0xff]
    %v97 = vld [vmem:[%s0 + $0x150] sm:$0xff]
    %v98 = vld [vmem:[%s0 + $0x158] sm:$0xff]
    %v99 = vld [vmem:[%s0 + $0x160] sm:$0xff]
    %v100 = vld [vmem:[%s0 + $0x168] sm:$0xff]
    %v101 = vld [vmem:[%s0 + $0x170] sm:$0xff]
    %v102 = vld [vmem:[%s0 + $0x178] sm:$0xff]
    %v103 = vld [vmem:[%s0 + $0x180] sm:$0xff]
    %v104 = vld [vmem:[%s0 + $0x188] sm:$0xff]
    %v105 = vld [vmem:[%s0 + $0x190] sm:$0xff]
    %v106 = vld [vmem:[%s0 + $0x198] sm:$0xff]
    %v107 = vld [vmem:[%s0 + $0x1a0] sm:$0xff]
    %v108 = vld [vmem:[%s0 + $0x1a8] sm:$0xff]
    %v109 = vld [vmem:[%s0 + $0x1b0] sm:$0xff]
    %v110 = vld [vmem:[%s0 + $0x1b8] sm:$0xff]
    %v111 = vld [vmem:[%s0 + $0x1c0] sm:$0xff]
    %v112 = vld [vmem:[%s0 + $0x1c8] sm:$0xff]
    %v113 = vld [vmem:[%s0 + $0x1d0] sm:$0xff]
    %v114 = vld [vmem:[%s0 + $0x1d8] sm:$0xff]
    %v115 = vld [vmem:[%s0 + $0x1e0] sm:$0xff]
    %v116 = vld [vmem:[%s0 + $0x1e8] sm:$0xff]
    %v117 = vld [vmem:[%s0 + $0x1f0] sm:$0xff]
    %v118 = vld [vmem:[%s0 + $0x1f8] sm:$0xff]
    %v119 = vld [vmem:[%s0 + $0x200] sm:$0xff]
    %v120 = vld [vmem:[%s0 + $0x208] sm:$0xff]
    %v121 = vld [vmem:[%s0 + $0x210] sm:$0xff]
    %v122 = vld [vmem:[%s0 + $0x218] sm:$0xff]
    %v123 = vld [vmem:[%s0 + $0x220] sm:$0xff]
    %v124 = vld [vmem:[%s0 + $0x228] sm:$0xff]
    %v125 = vld [vmem:[%s0 + $0x230] sm:$0xff]
    %v126 = vld [vmem:[%s0 + $0x238] sm:$0xff]
    %v127 = vld [vmem:[%s0 + $0x240] sm:$0xff]
    %v128 = vld [vmem:[%s0 + $0x248] sm:$0xff]
    %v129 = vld [vmem:[%s0 + $0x250] sm:$0xff]
    %v130 = vld [vmem:[%s0 + $0x258] sm:$0xff]
    %v131 = vld [vmem:[%s0 + $0x260] sm:$0xff]
    %v132 = vld [vmem:[%s0 + $0x268] sm:$0xff]
    %v133 = vld [vmem:[%s0 + $0x270] sm:$0xff]
    %v134 = vld [vmem:[%s0 + $0x278] sm:$0xff]
    %v135 = vld [vmem:[%s0 + $0x280] sm:$0xff]
    %v136 = vld [vmem:[%s0 + $0x288] sm:$0xff]
    %v137 = vld [vmem:[%s0 + $0x290] sm:$0xff]
    %v138 = vld [vmem:[%s0 + $0x298] sm:$0xff]
    %v139 = vld [vmem:[%s0 + $0x2a0] sm:$0xff]
    %v140 = vld [vmem:[%s0 + $0x2a8] sm:$0xff]
    %v141 = vld [vmem:[%s0 + $0x2b0] sm:$0xff]
    %v142 = vld [vmem:[%s0 + $0x2b8] sm:$0xff]
    %v143 = vld [vmem:[%s0 + $0x2c0] sm:$0xff]
    %v144 = vld [vmem:[%s0 + $0x2c8] sm:$0xff]
    %v145 = vld [vmem:[%s0 + $0x2d0] sm:$0xff]
    %v146 = vld [vmem:[%s0 + $0x2d8] sm:$0xff]
    %v147 = vld [vmem:[%s0 + $0x2e0] sm:$0xff]
    %v148 = vld [vmem:[%s0 + $0x2e8] sm:$0xff]
    %v149 = vld [vmem:[%s0 + $0x2f0] sm:$0xff]
    %v150 = vld [vmem:[%s0 + $0x2f8] sm:$0xff]
    %v151 = vld [vmem:[%s0 + $0x300] sm:$0xff]
    %v152 = vld [vmem:[%s0 + $0x308] sm:$0xff]
    %v153 = vld [vmem:[%s0 + $0x310] sm:$0xff]
    %v154 = vld [vmem:[%s0 + $0x318] sm:$0xff]
    %v155 = vld [vmem:[%s0 + $0x320] sm:$0xff]
    %v156 = vld [vmem:[%s0 + $0x328] sm:$0xff]
    %v157 = vld [vmem:[%s0 + $0x330] sm:$0xff]
    %v158 = vld [vmem:[%s0 + $0x338] sm:$0xff]
    %v159 = vld [vmem:[%s0 + $0x340] sm:$0xff]
    %v160 = vld [vmem:[%s0 + $0x348] sm:$0xff]
    %v161 = vld [vmem:[%s0 + $0x350] sm:$0xff]
    %v162 = vld [vmem:[%s0 + $0x358] sm:$0xff]
    %v163 = vld [vmem:[%s0 + $0x360] sm:$0xff]
    %v164 = vld [vmem:[%s0 + $0x368] sm:$0xff]
    %v165 = vld [vmem:[%s0 + $0x370] sm:$0xff]
    %v166 = vld [vmem:[%s0 + $0x378] sm:$0xff]
    %v167 = vld [vmem:[%s0 + $0x380] sm:$0xff]
    %v168 = vld [vmem:[%s0 + $0x388] sm:$0xff]
    %v169 = vld [vmem:[%s0 + $0x390] sm:$0xff]
    %v170 = vld [vmem:[%s0 + $0x398] sm:$0xff]
    %v171 = vld [vmem:[%s0 + $0x3a0] sm:$0xff]
    %v172 = vld [vmem:[%s0 + $0x3a8] sm:$0xff]
    %v173 = vld [vmem:[%s0 + $0x3b0] sm:$0xff]
    %v174 = vld [vmem:[%s0 + $0x3b8] sm:$0xff]
    %v175 = vld [vmem:[%s0 + $0x3c0] sm:$0xff]
    %v176 = vld [vmem:[%s0 + $0x3c8] sm:$0xff]
    %v177 = vld [vmem:[%s0 + $0x3d0] sm:$0xff]
    %v178 = vld [vmem:[%s0 + $0x3d8] sm:$0xff]
    %v179 = vld [vmem:[%s0 + $0x3e0] sm:$0xff]
    %v180 = vld [vmem:[%s0 + $0x3e8] sm:$0xff]
    %v181 = vld [vmem:[%s0 + $0x3f0] sm:$0xff]
    %v182 = vld [vmem:[%s0 + $0x3f8] sm:$0xff]
    %v183 = vld [vmem:[%s0 + $0x400] sm:$0xff]
    %v184 = vld [vmem:[%s0 + $0x408] sm:$0xff]
    %v185 = vld [vmem:[%s0 + $0x410] sm:$0xff]
    %v186 = vld [vmem:[%s0 + $0x418] sm:$0xff]
    %v187 = vld [vmem:[%s0 + $0x420] sm:$0xff]
    %v188 = vld [vmem:[%s0 + $0x428] sm:$0xff]
    %v189 = vld [vmem:[%s0 + $0x430] sm:$0xff]
    %v190 = vld [vmem:[%s0 + $0x438] sm:$0xff]
    %v191 = vld [vmem:[%s0 + $0x440] sm:$0xff]
    %v192 = vld [vmem:[%s0 + $0x448] sm:$0xff]
    %v193 = vld [vmem:[%s0 + $0x450] sm:$0xff]
    %v194 = vld [vmem:[%s0 + $0x458] sm:$0xff]
    %v195 = vld [vmem:[%s0 + $0x460] sm:$0xff]
    %v196 = vld [vmem:[%s0 + $0x468] sm:$0xff]
    %v197 = vld [vmem:[%s0 + $0x470] sm:$0xff]
    %v198 = vld [vmem:[%s0 + $0x478] sm:$0xff]
    %v199 = vld [vmem:[%s0 + $0x480] sm:$0xff]
    %v200 = vld [vmem:[%s0 + $0x488] sm:$0xff]
    %v201 = vld [vmem:[%s0 + $0x490] sm:$0xff]
    %v202 = vld [vmem:[%s0 + $0x498] sm:$0xff]
    %v203 = vld [vmem:[%s0 + $0x4a0] sm:$0xff]
    %v204 = vld [vmem:[%s0 + $0x4a8] sm:$0xff]
    %v205 = vld [vmem:[%s0 + $0x4b0] sm:$0xff]
    %v206 = vld [vmem:[%s0 + $0x4b8] sm:$0xff]
    %v207 = vld [vmem:[%s0 + $0x4c0] sm:$0xff]
    %v208 = vld [vmem:[%s0 + $0x4c8] sm:$0xff]
    %v209 = vld [vmem:[%s0 + $0x4d0] sm:$0xff]
    %v210 = vld [vmem:[%s0 + $0x4d8] sm:$0xff]
    %v211 = vld [vmem:[%s0 + $0x4e0] sm:$0xff]
    %v212 = vld [vmem:[%s0 + $0x4e8] sm:$0xff]
    %v213 = vld [vmem:[%s0 + $0x4f0] sm:$0xff]
    %v214 = vld [vmem:[%s0 + $0x4f8] sm:$0xff]
    %v215 = vld [vmem:[%s0 + $0x500] sm:$0xff]
    %v216 = vld [vmem:[%s0 + $0x508] sm:$0xff]
    %v217 = vld [vmem:[%s0 + $0x510] sm:$0xff]
    %v218 = vld [vmem:[%s0 + $0x518] sm:$0xff]
    %v219 = vld [vmem:[%s0 + $0x520] sm:$0xff]
    %v220 = vld [vmem:[%s0 + $0x528] sm:$0xff]
    %v221 = vld [vmem:[%s0 + $0x530] sm:$0xff]
    %v222 = vld [vmem:[%s0 + $0x538] sm:$0xff]
    %v223 = vld [vmem:[%s0 + $0x540] sm:$0xff]
    %v224 = vld [vmem:[%s0 + $0x548] sm:$0xff]
    %v225 = vld [vmem:[%s0 + $0x550] sm:$0xff]
    %v226 = vld [vmem:[%s0 + $0x558] sm:$0xff]
    %v227 = vld [vmem:[%s0 + $0x560] sm:$0xff]
    %v228 = vld [vmem:[%s0 + $0x568] sm:$0xff]
    %v229 = vld [vmem:[%s0 + $0x570] sm:$0xff]
    %v230 = vld [vmem:[%s0 + $0x578] sm:$0xff]
    %v231 = vld [vmem:[%s0 + $0x580] sm:$0xff]
    %v232 = vld [vmem:[%s0 + $0x588] sm:$0xff]
    %v233 = vld [vmem:[%s0 + $0x590] sm:$0xff]
    %v234 = vld [vmem:[%s0 + $0x598] sm:$0xff]
    %v235 = vld [vmem:[%s0 + $0x5a0] sm:$0xff]
    %v236 = vld [vmem:[%s0 + $0x5a8] sm:$0xff]
    %v237 = vld [vmem:[%s0 + $0x5b0] sm:$0xff]
    %v238 = vld [vmem:[%s0 + $0x5b8] sm:$0xff]
    %v239 = vld [vmem:[%s0 + $0x5c0] sm:$0xff]
    %v240 = vld [vmem:[%s0 + $0x5c8] sm:$0xff]
    %v241 = vld [vmem:[%s0 + $0x5d0] sm:$0xff]
    %v242 = vld [vmem:[%s0 + $0x5d8] sm:$0xff]
    %v243 = vld [vmem:[%s0 + $0x5e0] sm:$0xff]
    %v244 = vld [vmem:[%s0 + $0x5e8] sm:$0xff]
    %v245 = vld [vmem:[%s0 + $0x5f0] sm:$0xff]
    %v246 = vld [vmem:[%s0 + $0x5f8] sm:$0xff]
    %v247 = vpack.c.bf16 %v57, %v55
    %v248 = vpack.c.bf16 %v58, %v56
    %v249 = vpack.c.bf16 %v61, %v59
    %v250 = vpack.c.bf16 %v62, %v60
    %v251 = vpack.c.bf16 %v65, %v63
    %v252 = vpack.c.bf16 %v66, %v64
    %v253 = vpack.c.bf16 %v69, %v67
    %v254 = vpack.c.bf16 %v70, %v68
    %v255 = vpack.c.bf16 %v73, %v71
    %v256 = vpack.c.bf16 %v74, %v72
    %v257 = vpack.c.bf16 %v77, %v75
    %v258 = vpack.c.bf16 %v78, %v76
    %v259 = vpack.c.bf16 %v81, %v79
    %v260 = vpack.c.bf16 %v82, %v80
    %v261 = vpack.c.bf16 %v85, %v83
    %v262 = vpack.c.bf16 %v86, %v84
    %v263 = vpack.c.bf16 %v89, %v87
    %v264 = vpack.c.bf16 %v90, %v88
    %v265 = vpack.c.bf16 %v93, %v91
    %v266 = vpack.c.bf16 %v94, %v92
    %v267 = vpack.c.bf16 %v97, %v95
    %v268 = vpack.c.bf16 %v98, %v96
    %v269 = vpack.c.bf16 %v101, %v99
    %v270 = vpack.c.bf16 %v102, %v100
    %v271 = vpack.c.bf16 %v105, %v103
    %v272 = vpack.c.bf16 %v106, %v104
    %v273 = vpack.c.bf16 %v109, %v107
    %v274 = vpack.c.bf16 %v110, %v108
    %v275 = vpack.c.bf16 %v113, %v111
    %v276 = vpack.c.bf16 %v114, %v112
    %v277 = vpack.c.bf16 %v117, %v115
    %v278 = vpack.c.bf16 %v118, %v116
    %v279 = vpack.c.bf16 %v121, %v119
    %v280 = vpack.c.bf16 %v122, %v120
    %v281 = vpack.c.bf16 %v125, %v123
    %v282 = vpack.c.bf16 %v126, %v124
    %v283 = vpack.c.bf16 %v129, %v127
    %v284 = vpack.c.bf16 %v130, %v128
    %v285 = vpack.c.bf16 %v133, %v131
    %v286 = vpack.c.bf16 %v134, %v132
    %v287 = vpack.c.bf16 %v137, %v135
    %v288 = vpack.c.bf16 %v138, %v136
    %v289 = vpack.c.bf16 %v141, %v139
    %v290 = vpack.c.bf16 %v142, %v140
    %v291 = vpack.c.bf16 %v145, %v143
    %v292 = vpack.c.bf16 %v146, %v144
    %v293 = vpack.c.bf16 %v149, %v147
    %v294 = vpack.c.bf16 %v150, %v148
    %v295 = vpack.c.bf16 %v153, %v151
    %v296 = vpack.c.bf16 %v154, %v152
    %v297 = vpack.c.bf16 %v157, %v155
    %v298 = vpack.c.bf16 %v158, %v156
    %v299 = vpack.c.bf16 %v161, %v159
    %v300 = vpack.c.bf16 %v162, %v160
    %v301 = vpack.c.bf16 %v165, %v163
    %v302 = vpack.c.bf16 %v166, %v164
    %v303 = vpack.c.bf16 %v169, %v167
    %v304 = vpack.c.bf16 %v170, %v168
    %v305 = vpack.c.bf16 %v173, %v171
    %v306 = vpack.c.bf16 %v174, %v172
    %v307 = vpack.c.bf16 %v177, %v175
    %v308 = vpack.c.bf16 %v178, %v176
    %v309 = vpack.c.bf16 %v181, %v179
    %v310 = vpack.c.bf16 %v182, %v180
    %v311 = vpack.c.bf16 %v185, %v183
    %v312 = vpack.c.bf16 %v186, %v184
    %v313 = vpack.c.bf16 %v189, %v187
    %v314 = vpack.c.bf16 %v190, %v188
    %v315 = vpack.c.bf16 %v193, %v191
    %v316 = vpack.c.bf16 %v194, %v192
    %v317 = vpack.c.bf16 %v197, %v195
    %v318 = vpack.c.bf16 %v198, %v196
    %v319 = vpack.c.bf16 %v201, %v199
    %v320 = vpack.c.bf16 %v202, %v200
    %v321 = vpack.c.bf16 %v205, %v203
    %v322 = vpack.c.bf16 %v206, %v204
    %v323 = vpack.c.bf16 %v209, %v207
    %v324 = vpack.c.bf16 %v210, %v208
    %v325 = vpack.c.bf16 %v213, %v211
    %v326 = vpack.c.bf16 %v214, %v212
    %v327 = vpack.c.bf16 %v217, %v215
    %v328 = vpack.c.bf16 %v218, %v216
    %v329 = vpack.c.bf16 %v221, %v219
    %v330 = vpack.c.bf16 %v222, %v220
    %v331 = vpack.c.bf16 %v225, %v223
    %v332 = vpack.c.bf16 %v226, %v224
    %v333 = vpack.c.bf16 %v229, %v227
    %v334 = vpack.c.bf16 %v230, %v228
    %v335 = vpack.c.bf16 %v233, %v231
    %v336 = vpack.c.bf16 %v234, %v232
    %v337 = vpack.c.bf16 %v237, %v235
    %v338 = vpack.c.bf16 %v238, %v236
    %v339 = vpack.c.bf16 %v241, %v239
    %v340 = vpack.c.bf16 %v242, %v240
    %v341 = vpack.c.bf16 %v245, %v243
    %v342 = vpack.c.bf16 %v246, %v244
    %v343 = vld [vmem:[%s1] sm:$0xff]
    %v344 = vld [vmem:[%s1 + $0x8] sm:$0xff]
    %v345 = vld [vmem:[%s1 + $0x10] sm:$0xff]
    %v346 = vld [vmem:[%s1 + $0x18] sm:$0xff]
    %v347 = vld [vmem:[%s1 + $0x20] sm:$0xff]
    %v348 = vld [vmem:[%s1 + $0x28] sm:$0xff]
    %v349 = vld [vmem:[%s1 + $0x30] sm:$0xff]
    %v350 = vld [vmem:[%s1 + $0x38] sm:$0xff]
    %v351 = vld [vmem:[%s1 + $0x40] sm:$0xff]
    %v352 = vld [vmem:[%s1 + $0x48] sm:$0xff]
    %v353 = vld [vmem:[%s1 + $0x50] sm:$0xff]
    %v354 = vld [vmem:[%s1 + $0x58] sm:$0xff]
    %v355 = vld [vmem:[%s1 + $0x60] sm:$0xff]
    %v356 = vld [vmem:[%s1 + $0x68] sm:$0xff]
    %v357 = vld [vmem:[%s1 + $0x70] sm:$0xff]
    %v358 = vld [vmem:[%s1 + $0x78] sm:$0xff]
    %v359 = vld [vmem:[%s1 + $0x80] sm:$0xff]
    %v360 = vld [vmem:[%s1 + $0x88] sm:$0xff]
    %v361 = vld [vmem:[%s1 + $0x90] sm:$0xff]
    %v362 = vld [vmem:[%s1 + $0x98] sm:$0xff]
    %v363 = vld [vmem:[%s1 + $0xa0] sm:$0xff]
    %v364 = vld [vmem:[%s1 + $0xa8] sm:$0xff]
    %v365 = vld [vmem:[%s1 + $0xb0] sm:$0xff]
    %v366 = vld [vmem:[%s1 + $0xb8] sm:$0xff]
    %v367 = vld [vmem:[%s1 + $0xc0] sm:$0xff]
    %v368 = vld [vmem:[%s1 + $0xc8] sm:$0xff]
    %v369 = vld [vmem:[%s1 + $0xd0] sm:$0xff]
    %v370 = vld [vmem:[%s1 + $0xd8] sm:$0xff]
    %v371 = vld [vmem:[%s1 + $0xe0] sm:$0xff]
    %v372 = vld [vmem:[%s1 + $0xe8] sm:$0xff]
    %v373 = vld [vmem:[%s1 + $0xf0] sm:$0xff]
    %v374 = vld [vmem:[%s1 + $0xf8] sm:$0xff]
    %v375 = vld [vmem:[%s1 + $0x100] sm:$0xff]
    %v376 = vld [vmem:[%s1 + $0x108] sm:$0xff]
    %v377 = vld [vmem:[%s1 + $0x110] sm:$0xff]
    %v378 = vld [vmem:[%s1 + $0x118] sm:$0xff]
    %v379 = vld [vmem:[%s1 + $0x120] sm:$0xff]
    %v380 = vld [vmem:[%s1 + $0x128] sm:$0xff]
    %v381 = vld [vmem:[%s1 + $0x130] sm:$0xff]
    %v382 = vld [vmem:[%s1 + $0x138] sm:$0xff]
    %v383 = vld [vmem:[%s1 + $0x140] sm:$0xff]
    %v384 = vld [vmem:[%s1 + $0x148] sm:$0xff]
    %v385 = vld [vmem:[%s1 + $0x150] sm:$0xff]
    %v386 = vld [vmem:[%s1 + $0x158] sm:$0xff]
    %v387 = vld [vmem:[%s1 + $0x160] sm:$0xff]
    %v388 = vld [vmem:[%s1 + $0x168] sm:$0xff]
    %v389 = vld [vmem:[%s1 + $0x170] sm:$0xff]
    %v390 = vld [vmem:[%s1 + $0x178] sm:$0xff]
    %v439 = vunpack.c.l.b16 %v343
    %v440 = vunpack.c.h.b16 %v343
    %v441 = vunpack.c.l.b16 %v344
    %v442 = vunpack.c.h.b16 %v344
    %v443 = vunpack.c.l.b16 %v345
    %v444 = vunpack.c.h.b16 %v345
    %v445 = vunpack.c.l.b16 %v346
    %v446 = vunpack.c.h.b16 %v346
    %v447 = vunpack.c.l.b16 %v347
    %v448 = vunpack.c.h.b16 %v347
    %v449 = vunpack.c.l.b16 %v348
    %v450 = vunpack.c.h.b16 %v348
    %v451 = vunpack.c.l.b16 %v349
    %v452 = vunpack.c.h.b16 %v349
    %v453 = vunpack.c.l.b16 %v350
    %v454 = vunpack.c.h.b16 %v350
    %v455 = vunpack.c.l.b16 %v351
    %v456 = vunpack.c.h.b16 %v351
    %v457 = vunpack.c.l.b16 %v352
    %v458 = vunpack.c.h.b16 %v352
    %v459 = vunpack.c.l.b16 %v353
    %v460 = vunpack.c.h.b16 %v353
    %v461 = vunpack.c.l.b16 %v354
    %v462 = vunpack.c.h.b16 %v354
    %v463 = vunpack.c.l.b16 %v355
    %v464 = vunpack.c.h.b16 %v355
    %v465 = vunpack.c.l.b16 %v356
    %v466 = vunpack.c.h.b16 %v356
    %v467 = vunpack.c.l.b16 %v357
    %v468 = vunpack.c.h.b16 %v357
    %v469 = vunpack.c.l.b16 %v358
    %v470 = vunpack.c.h.b16 %v358
    %v471 = vunpack.c.l.b16 %v359
    %v472 = vunpack.c.h.b16 %v359
    %v473 = vunpack.c.l.b16 %v360
    %v474 = vunpack.c.h.b16 %v360
    %v475 = vunpack.c.l.b16 %v361
    %v476 = vunpack.c.h.b16 %v361
    %v477 = vunpack.c.l.b16 %v362
    %v478 = vunpack.c.h.b16 %v362
    %v479 = vunpack.c.l.b16 %v363
    %v480 = vunpack.c.h.b16 %v363
    %v481 = vunpack.c.l.b16 %v364
    %v482 = vunpack.c.h.b16 %v364
    %v483 = vunpack.c.l.b16 %v365
    %v484 = vunpack.c.h.b16 %v365
    %v485 = vunpack.c.l.b16 %v366
    %v486 = vunpack.c.h.b16 %v366
    %v487 = vunpack.c.l.b16 %v367
    %v488 = vunpack.c.h.b16 %v367
    %v489 = vunpack.c.l.b16 %v368
    %v490 = vunpack.c.h.b16 %v368
    %v491 = vunpack.c.l.b16 %v369
    %v492 = vunpack.c.h.b16 %v369
    %v493 = vunpack.c.l.b16 %v370
    %v494 = vunpack.c.h.b16 %v370
    %v495 = vunpack.c.l.b16 %v371
    %v496 = vunpack.c.h.b16 %v371
    %v497 = vunpack.c.l.b16 %v372
    %v498 = vunpack.c.h.b16 %v372
    %v499 = vunpack.c.l.b16 %v373
    %v500 = vunpack.c.h.b16 %v373
    %v501 = vunpack.c.l.b16 %v374
    %v502 = vunpack.c.h.b16 %v374
    %v503 = vunpack.c.l.b16 %v375
    %v504 = vunpack.c.h.b16 %v375
    %v505 = vunpack.c.l.b16 %v376
    %v506 = vunpack.c.h.b16 %v376
    %v507 = vunpack.c.l.b16 %v377
    %v508 = vunpack.c.h.b16 %v377
    %v509 = vunpack.c.l.b16 %v378
    %v510 = vunpack.c.h.b16 %v378
    %v511 = vunpack.c.l.b16 %v379
    %v512 = vunpack.c.h.b16 %v379
    %v513 = vunpack.c.l.b16 %v380
    %v514 = vunpack.c.h.b16 %v380
    %v515 = vunpack.c.l.b16 %v381
    %v516 = vunpack.c.h.b16 %v381
    %v517 = vunpack.c.l.b16 %v382
    %v518 = vunpack.c.h.b16 %v382
    %v519 = vunpack.c.l.b16 %v383
    %v520 = vunpack.c.h.b16 %v383
    %v521 = vunpack.c.l.b16 %v384
    %v522 = vunpack.c.h.b16 %v384
    %v523 = vunpack.c.l.b16 %v385
    %v524 = vunpack.c.h.b16 %v385
    %v525 = vunpack.c.l.b16 %v386
    %v526 = vunpack.c.h.b16 %v386
    %v527 = vunpack.c.l.b16 %v387
    %v528 = vunpack.c.h.b16 %v387
    %v529 = vunpack.c.l.b16 %v388
    %v530 = vunpack.c.h.b16 %v388
    %v531 = vunpack.c.l.b16 %v389
    %v532 = vunpack.c.h.b16 %v389
    %v533 = vunpack.c.l.b16 %v390
    %v534 = vunpack.c.h.b16 %v390
    %v535 = vpack.c.b16 %v445, %v439
    %v536 = vpack.c.b16 %v446, %v440
    %v537 = vpack.c.b16 %v447, %v441
    %v538 = vpack.c.b16 %v448, %v442
    %v539 = vpack.c.b16 %v449, %v443
    %v540 = vpack.c.b16 %v450, %v444
    %v541 = vpack.c.b16 %v457, %v451
    %v542 = vpack.c.b16 %v458, %v452
    %v543 = vpack.c.b16 %v459, %v453
    %v544 = vpack.c.b16 %v460, %v454
    %v545 = vpack.c.b16 %v461, %v455
    %v546 = vpack.c.b16 %v462, %v456
    %v547 = vpack.c.b16 %v469, %v463
    %v548 = vpack.c.b16 %v470, %v464
    %v549 = vpack.c.b16 %v471, %v465
    %v550 = vpack.c.b16 %v472, %v466
    %v551 = vpack.c.b16 %v473, %v467
    %v552 = vpack.c.b16 %v474, %v468
    %v553 = vpack.c.b16 %v481, %v475
    %v554 = vpack.c.b16 %v482, %v476
    %v555 = vpack.c.b16 %v483, %v477
    %v556 = vpack.c.b16 %v484, %v478
    %v557 = vpack.c.b16 %v485, %v479
    %v558 = vpack.c.b16 %v486, %v480
    %v559 = vpack.c.b16 %v493, %v487
    %v560 = vpack.c.b16 %v494, %v488
    %v561 = vpack.c.b16 %v495, %v489
    %v562 = vpack.c.b16 %v496, %v490
    %v563 = vpack.c.b16 %v497, %v491
    %v564 = vpack.c.b16 %v498, %v492
    %v565 = vpack.c.b16 %v505, %v499
    %v566 = vpack.c.b16 %v506, %v500
    %v567 = vpack.c.b16 %v507, %v501
    %v568 = vpack.c.b16 %v508, %v502
    %v569 = vpack.c.b16 %v509, %v503
    %v570 = vpack.c.b16 %v510, %v504
    %v571 = vpack.c.b16 %v517, %v511
    %v572 = vpack.c.b16 %v518, %v512
    %v573 = vpack.c.b16 %v519, %v513
    %v574 = vpack.c.b16 %v520, %v514
    %v575 = vpack.c.b16 %v521, %v515
    %v576 = vpack.c.b16 %v522, %v516
    %v577 = vpack.c.b16 %v529, %v523
    %v578 = vpack.c.b16 %v530, %v524
    %v579 = vpack.c.b16 %v531, %v525
    %v580 = vpack.c.b16 %v532, %v526
    %v581 = vpack.c.b16 %v533, %v527
    %v582 = vpack.c.b16 %v534, %v528
    %631 = vmatprep.subr.bf16.mxu0 %v248
    %632 = vmatpush1.bf16.msra.mxu0 %v247
    %633 = vmatprep.subr.bf16.mxu0 %v250
    %634 = vmatpush1.bf16.msra.mxu0 %v249
    %635 = vmatprep.subr.bf16.mxu0 %v252
    %636 = vmatpush1.bf16.msra.mxu0 %v251
    %637 = vmatprep.subr.bf16.mxu0 %v254
    %638 = vmatpush1.bf16.msra.mxu0 %v253
    %639 = vmatprep.subr.bf16.mxu0 %v256
    %640 = vmatpush1.bf16.msra.mxu0 %v255
    %641 = vmatprep.subr.bf16.mxu0 %v258
    %642 = vmatpush1.bf16.msra.mxu0 %v257
    %643 = vmatprep.subr.bf16.mxu0 %v260
    %644 = vmatpush1.bf16.msra.mxu0 %v259
    %645 = vmatprep.subr.bf16.mxu0 %v262
    %646 = vmatpush1.bf16.msra.mxu0 %v261
    %647 = vmatprep.subr.bf16.mxu0 %v264
    %648 = vmatpush1.bf16.msra.mxu0 %v263
    %649 = vmatprep.subr.bf16.mxu0 %v266
    %650 = vmatpush1.bf16.msra.mxu0 %v265
    %651 = vmatprep.subr.bf16.mxu0 %v268
    %652 = vmatpush1.bf16.msra.mxu0 %v267
    %653 = vmatprep.subr.bf16.mxu0 %v270
    %654 = vmatpush1.bf16.msra.mxu0 %v269
    %655 = vmatprep.subr.bf16.mxu0 %v272
    %656 = vmatpush1.bf16.msra.mxu0 %v271
    %657 = vmatprep.subr.bf16.mxu0 %v274
    %658 = vmatpush1.bf16.msra.mxu0 %v273
    %659 = vmatprep.subr.bf16.mxu0 %v276
    %660 = vmatpush1.bf16.msra.mxu0 %v275
    %661 = vmatprep.subr.bf16.mxu0 %v278
    %662 = vmatpush1.bf16.msra.mxu0 %v277
    %663 = vmatprep.mubr.bf16.mxu0 %v536
    %664 = vmatmul.mubr.bf16.gmra.mrb[0].mxu0 %v535
    %v665 = vpop.f32.mrb[0].mxu0
    %v666 = vadd.f32 0.0, %v665
    %v667 = vpop.f32.mrb[0].mxu0
    %v668 = vadd.f32 0.0, %v667
    %v669 = vpop.f32.mrb[0].mxu0
    %v670 = vadd.f32 0.0, %v669
    %v671 = vpop.f32.mrb[0].mxu0
    %v672 = vadd.f32 0.0, %v671
    %673 = vmatprep.mubr.bf16.mxu0 %v542
    %674 = vmatmul.mubr.bf16.gmra.mrb[0].mxu0 %v541
    %v675 = vpop.f32.mrb[0].mxu0
    %v676 = vadd.f32 0.0, %v675
    %v677 = vpop.f32.mrb[0].mxu0
    %v678 = vadd.f32 0.0, %v677
    %v679 = vpop.f32.mrb[0].mxu0
    %v680 = vadd.f32 0.0, %v679
    %v681 = vpop.f32.mrb[0].mxu0
    %v682 = vadd.f32 0.0, %v681
    %683 = vmatprep.mubr.bf16.mxu0 %v548
    %684 = vmatmul.mubr.bf16.gmra.mrb[0].mxu0 %v547
    %v685 = vpop.f32.mrb[0].mxu0
    %v686 = vadd.f32 0.0, %v685
    %v687 = vpop.f32.mrb[0].mxu0
    %v688 = vadd.f32 0.0, %v687
    %v689 = vpop.f32.mrb[0].mxu0
    %v690 = vadd.f32 0.0, %v689
    %v691 = vpop.f32.mrb[0].mxu0
    %v692 = vadd.f32 0.0, %v691
    %693 = vmatprep.mubr.bf16.mxu0 %v554
    %694 = vmatmul.mubr.bf16.gmra.mrb[0].mxu0 %v553
    %v695 = vpop.f32.mrb[0].mxu0
    %v696 = vadd.f32 0.0, %v695
    %v697 = vpop.f32.mrb[0].mxu0
    %v698 = vadd.f32 0.0, %v697
    %v699 = vpop.f32.mrb[0].mxu0
    %v700 = vadd.f32 0.0, %v699
    %v701 = vpop.f32.mrb[0].mxu0
    %v702 = vadd.f32 0.0, %v701
    %703 = vmatprep.mubr.bf16.mxu0 %v560
    %704 = vmatmul.mubr.bf16.gmra.mrb[0].mxu0 %v559
    %v705 = vpop.f32.mrb[0].mxu0
    %v706 = vadd.f32 0.0, %v705
    %v707 = vpop.f32.mrb[0].mxu0
    %v708 = vadd.f32 0.0, %v707
    %v709 = vpop.f32.mrb[0].mxu0
    %v710 = vadd.f32 0.0, %v709
    %v711 = vpop.f32.mrb[0].mxu0
    %v712 = vadd.f32 0.0, %v711
    %713 = vmatprep.mubr.bf16.mxu0 %v566
    %714 = vmatmul.mubr.bf16.gmra.mrb[0].mxu0 %v565
    %v715 = vpop.f32.mrb[0].mxu0
    %v716 = vadd.f32 0.0, %v715
    %v717 = vpop.f32.mrb[0].mxu0
    %v718 = vadd.f32 0.0, %v717
    %v719 = vpop.f32.mrb[0].mxu0
    %v720 = vadd.f32 0.0, %v719
    %v721 = vpop.f32.mrb[0].mxu0
    %v722 = vadd.f32 0.0, %v721
    %723 = vmatprep.mubr.bf16.mxu0 %v572
    %724 = vmatmul.mubr.bf16.gmra.mrb[0].mxu0 %v571
    %v725 = vpop.f32.mrb[0].mxu0
    %v726 = vadd.f32 0.0, %v725
    %v727 = vpop.f32.mrb[0].mxu0
    %v728 = vadd.f32 0.0, %v727
    %v729 = vpop.f32.mrb[0].mxu0
    %v730 = vadd.f32 0.0, %v729
    %v731 = vpop.f32.mrb[0].mxu0
    %v732 = vadd.f32 0.0, %v731
    %733 = vmatprep.mubr.bf16.mxu0 %v578
    %734 = vmatmul.mubr.bf16.gmra.mrb[0].mxu0 %v577
    %v735 = vpop.f32.mrb[0].mxu0
    %v736 = vadd.f32 0.0, %v735
    %v737 = vpop.f32.mrb[0].mxu0
    %v738 = vadd.f32 0.0, %v737
    %v739 = vpop.f32.mrb[0].mxu0
    %v740 = vadd.f32 0.0, %v739
    %v741 = vpop.f32.mrb[0].mxu0
    %v742 = vadd.f32 0.0, %v741
    %743 = vdwg.mxu0
    %744 = vmatprep.subr.bf16.mxu0 %v280
    %745 = vmatpush1.bf16.msra.mxu0 %v279
    %746 = vmatprep.subr.bf16.mxu0 %v282
    %747 = vmatpush1.bf16.msra.mxu0 %v281
    %748 = vmatprep.subr.bf16.mxu0 %v284
    %749 = vmatpush1.bf16.msra.mxu0 %v283
    %750 = vmatprep.subr.bf16.mxu0 %v286
    %751 = vmatpush1.bf16.msra.mxu0 %v285
    %752 = vmatprep.subr.bf16.mxu0 %v288
    %753 = vmatpush1.bf16.msra.mxu0 %v287
    %754 = vmatprep.subr.bf16.mxu0 %v290
    %755 = vmatpush1.bf16.msra.mxu0 %v289
    %756 = vmatprep.subr.bf16.mxu0 %v292
    %757 = vmatpush1.bf16.msra.mxu0 %v291
    %758 = vmatprep.subr.bf16.mxu0 %v294
    %759 = vmatpush1.bf16.msra.mxu0 %v293
    %760 = vmatprep.subr.bf16.mxu0 %v296
    %761 = vmatpush1.bf16.msra.mxu0 %v295
    %762 = vmatprep.subr.bf16.mxu0 %v298
    %763 = vmatpush1.bf16.msra.mxu0 %v297
    %764 = vmatprep.subr.bf16.mxu0 %v300
    %765 = vmatpush1.bf16.msra.mxu0 %v299
    %766 = vmatprep.subr.bf16.mxu0 %v302
    %767 = vmatpush1.bf16.msra.mxu0 %v301
    %768 = vmatprep.subr.bf16.mxu0 %v304
    %769 = vmatpush1.bf16.msra.mxu0 %v303
    %770 = vmatprep.subr.bf16.mxu0 %v306
    %771 = vmatpush1.bf16.msra.mxu0 %v305
    %772 = vmatprep.subr.bf16.mxu0 %v308
    %773 = vmatpush1.bf16.msra.mxu0 %v307
    %774 = vmatprep.subr.bf16.mxu0 %v310
    %775 = vmatpush1.bf16.msra.mxu0 %v309
    %776 = vmatprep.mubr.bf16.mxu0 %v538
    %777 = vmatmul.mubr.bf16.gmra.mrb[0].mxu0 %v537
    %v778 = vpop.f32.mrb[0].mxu0
    %v779 = vadd.f32 %v666, %v778
    %v780 = vpop.f32.mrb[0].mxu0
    %v781 = vadd.f32 %v668, %v780
    %v782 = vpop.f32.mrb[0].mxu0
    %v783 = vadd.f32 %v670, %v782
    %v784 = vpop.f32.mrb[0].mxu0
    %v785 = vadd.f32 %v672, %v784
    %786 = vmatprep.mubr.bf16.mxu0 %v544
    %787 = vmatmul.mubr.bf16.gmra.mrb[0].mxu0 %v543
    %v788 = vpop.f32.mrb[0].mxu0
    %v789 = vadd.f32 %v676, %v788
    %v790 = vpop.f32.mrb[0].mxu0
    %v791 = vadd.f32 %v678, %v790
    %v792 = vpop.f32.mrb[0].mxu0
    %v793 = vadd.f32 %v680, %v792
    %v794 = vpop.f32.mrb[0].mxu0
    %v795 = vadd.f32 %v682, %v794
    %796 = vmatprep.mubr.bf16.mxu0 %v550
    %797 = vmatmul.mubr.bf16.gmra.mrb[0].mxu0 %v549
    %v798 = vpop.f32.mrb[0].mxu0
    %v799 = vadd.f32 %v686, %v798
    %v800 = vpop.f32.mrb[0].mxu0
    %v801 = vadd.f32 %v688, %v800
    %v802 = vpop.f32.mrb[0].mxu0
    %v803 = vadd.f32 %v690, %v802
    %v804 = vpop.f32.mrb[0].mxu0
    %v805 = vadd.f32 %v692, %v804
    %806 = vmatprep.mubr.bf16.mxu0 %v556
    %807 = vmatmul.mubr.bf16.gmra.mrb[0].mxu0 %v555
    %v808 = vpop.f32.mrb[0].mxu0
    %v809 = vadd.f32 %v696, %v808
    %v810 = vpop.f32.mrb[0].mxu0
    %v811 = vadd.f32 %v698, %v810
    %v812 = vpop.f32.mrb[0].mxu0
    %v813 = vadd.f32 %v700, %v812
    %v814 = vpop.f32.mrb[0].mxu0
    %v815 = vadd.f32 %v702, %v814
    %816 = vmatprep.mubr.bf16.mxu0 %v562
    %817 = vmatmul.mubr.bf16.gmra.mrb[0].mxu0 %v561
    %v818 = vpop.f32.mrb[0].mxu0
    %v819 = vadd.f32 %v706, %v818
    %v820 = vpop.f32.mrb[0].mxu0
    %v821 = vadd.f32 %v708, %v820
    %v822 = vpop.f32.mrb[0].mxu0
    %v823 = vadd.f32 %v710, %v822
    %v824 = vpop.f32.mrb[0].mxu0
    %v825 = vadd.f32 %v712, %v824
    %826 = vmatprep.mubr.bf16.mxu0 %v568
    %827 = vmatmul.mubr.bf16.gmra.mrb[0].mxu0 %v567
    %v828 = vpop.f32.mrb[0].mxu0
    %v829 = vadd.f32 %v716, %v828
    %v830 = vpop.f32.mrb[0].mxu0
    %v831 = vadd.f32 %v718, %v830
    %v832 = vpop.f32.mrb[0].mxu0
    %v833 = vadd.f32 %v720, %v832
    %v834 = vpop.f32.mrb[0].mxu0
    %v835 = vadd.f32 %v722, %v834
    %836 = vmatprep.mubr.bf16.mxu0 %v574
    %837 = vmatmul.mubr.bf16.gmra.mrb[0].mxu0 %v573
    %v838 = vpop.f32.mrb[0].mxu0
    %v839 = vadd.f32 %v726, %v838
    %v840 = vpop.f32.mrb[0].mxu0
    %v841 = vadd.f32 %v728, %v840
    %v842 = vpop.f32.mrb[0].mxu0
    %v843 = vadd.f32 %v730, %v842
    %v844 = vpop.f32.mrb[0].mxu0
    %v845 = vadd.f32 %v732, %v844
    %846 = vmatprep.mubr.bf16.mxu0 %v580
    %847 = vmatmul.mubr.bf16.gmra.mrb[0].mxu0 %v579
    %v848 = vpop.f32.mrb[0].mxu0
    %v849 = vadd.f32 %v736, %v848
    %v850 = vpop.f32.mrb[0].mxu0
    %v851 = vadd.f32 %v738, %v850
    %v852 = vpop.f32.mrb[0].mxu0
    %v853 = vadd.f32 %v740, %v852
    %v854 = vpop.f32.mrb[0].mxu0
    %v855 = vadd.f32 %v742, %v854
    %856 = vdwg.mxu0
    %857 = vmatprep.subr.bf16.mxu0 %v312
    %858 = vmatpush1.bf16.msra.mxu0 %v311
    %859 = vmatprep.subr.bf16.mxu0 %v314
    %860 = vmatpush1.bf16.msra.mxu0 %v313
    %861 = vmatprep.subr.bf16.mxu0 %v316
    %862 = vmatpush1.bf16.msra.mxu0 %v315
    %863 = vmatprep.subr.bf16.mxu0 %v318
    %864 = vmatpush1.bf16.msra.mxu0 %v317
    %865 = vmatprep.subr.bf16.mxu0 %v320
    %866 = vmatpush1.bf16.msra.mxu0 %v319
    %867 = vmatprep.subr.bf16.mxu0 %v322
    %868 = vmatpush1.bf16.msra.mxu0 %v321
    %869 = vmatprep.subr.bf16.mxu0 %v324
    %870 = vmatpush1.bf16.msra.mxu0 %v323
    %871 = vmatprep.subr.bf16.mxu0 %v326
    %872 = vmatpush1.bf16.msra.mxu0 %v325
    %873 = vmatprep.subr.bf16.mxu0 %v328
    %874 = vmatpush1.bf16.msra.mxu0 %v327
    %875 = vmatprep.subr.bf16.mxu0 %v330
    %876 = vmatpush1.bf16.msra.mxu0 %v329
    %877 = vmatprep.subr.bf16.mxu0 %v332
    %878 = vmatpush1.bf16.msra.mxu0 %v331
    %879 = vmatprep.subr.bf16.mxu0 %v334
    %880 = vmatpush1.bf16.msra.mxu0 %v333
    %881 = vmatprep.subr.bf16.mxu0 %v336
    %882 = vmatpush1.bf16.msra.mxu0 %v335
    %883 = vmatprep.subr.bf16.mxu0 %v338
    %884 = vmatpush1.bf16.msra.mxu0 %v337
    %885 = vmatprep.subr.bf16.mxu0 %v340
    %886 = vmatpush1.bf16.msra.mxu0 %v339
    %887 = vmatprep.subr.bf16.mxu0 %v342
    %888 = vmatpush1.bf16.msra.mxu0 %v341
    %889 = vmatprep.mubr.bf16.mxu0 %v540
    %890 = vmatmul.mubr.bf16.gmra.mrb[0].mxu0 %v539
    %v891 = vpop.f32.mrb[0].mxu0
    %v892 = vadd.f32 %v779, %v891
    %v893 = vpop.f32.mrb[0].mxu0
    %v894 = vadd.f32 %v781, %v893
    %v895 = vpop.f32.mrb[0].mxu0
    %v896 = vadd.f32 %v783, %v895
    %v897 = vpop.f32.mrb[0].mxu0
    %v898 = vadd.f32 %v785, %v897
    %899 = vmatprep.mubr.bf16.mxu0 %v546
    %900 = vmatmul.mubr.bf16.gmra.mrb[0].mxu0 %v545
    %v901 = vpop.f32.mrb[0].mxu0
    %v902 = vadd.f32 %v789, %v901
    %v903 = vpop.f32.mrb[0].mxu0
    %v904 = vadd.f32 %v791, %v903
    %v905 = vpop.f32.mrb[0].mxu0
    %v906 = vadd.f32 %v793, %v905
    %v907 = vpop.f32.mrb[0].mxu0
    %v908 = vadd.f32 %v795, %v907
    %909 = vmatprep.mubr.bf16.mxu0 %v552
    %910 = vmatmul.mubr.bf16.gmra.mrb[0].mxu0 %v551
    %v911 = vpop.f32.mrb[0].mxu0
    %v912 = vadd.f32 %v799, %v911
    %v913 = vpop.f32.mrb[0].mxu0
    %v914 = vadd.f32 %v801, %v913
    %v915 = vpop.f32.mrb[0].mxu0
    %v916 = vadd.f32 %v803, %v915
    %v917 = vpop.f32.mrb[0].mxu0
    %v918 = vadd.f32 %v805, %v917
    %919 = vmatprep.mubr.bf16.mxu0 %v558
    %920 = vmatmul.mubr.bf16.gmra.mrb[0].mxu0 %v557
    %v921 = vpop.f32.mrb[0].mxu0
    %v922 = vadd.f32 %v809, %v921
    %v923 = vpop.f32.mrb[0].mxu0
    %v924 = vadd.f32 %v811, %v923
    %v925 = vpop.f32.mrb[0].mxu0
    %v926 = vadd.f32 %v813, %v925
    %v927 = vpop.f32.mrb[0].mxu0
    %v928 = vadd.f32 %v815, %v927
    %929 = vmatprep.mubr.bf16.mxu0 %v564
    %930 = vmatmul.mubr.bf16.gmra.mrb[0].mxu0 %v563
    %v931 = vpop.f32.mrb[0].mxu0
    %v932 = vadd.f32 %v819, %v931
    %v933 = vpop.f32.mrb[0].mxu0
    %v934 = vadd.f32 %v821, %v933
    %v935 = vpop.f32.mrb[0].mxu0
    %v936 = vadd.f32 %v823, %v935
    %v937 = vpop.f32.mrb[0].mxu0
    %v938 = vadd.f32 %v825, %v937
    %939 = vmatprep.mubr.bf16.mxu0 %v570
    %940 = vmatmul.mubr.bf16.gmra.mrb[0].mxu0 %v569
    %v941 = vpop.f32.mrb[0].mxu0
    %v942 = vadd.f32 %v829, %v941
    %v943 = vpop.f32.mrb[0].mxu0
    %v944 = vadd.f32 %v831, %v943
    %v945 = vpop.f32.mrb[0].mxu0
    %v946 = vadd.f32 %v833, %v945
    %v947 = vpop.f32.mrb[0].mxu0
    %v948 = vadd.f32 %v835, %v947
    %949 = vmatprep.mubr.bf16.mxu0 %v576
    %950 = vmatmul.mubr.bf16.gmra.mrb[0].mxu0 %v575
    %v951 = vpop.f32.mrb[0].mxu0
    %v952 = vadd.f32 %v839, %v951
    %v953 = vpop.f32.mrb[0].mxu0
    %v954 = vadd.f32 %v841, %v953
    %v955 = vpop.f32.mrb[0].mxu0
    %v956 = vadd.f32 %v843, %v955
    %v957 = vpop.f32.mrb[0].mxu0
    %v958 = vadd.f32 %v845, %v957
    %959 = vmatprep.mubr.bf16.mxu0 %v582
    %960 = vmatmul.mubr.bf16.gmra.mrb[0].mxu0 %v581
    %v961 = vpop.f32.mrb[0].mxu0
    %v962 = vadd.f32 %v849, %v961
    %v963 = vpop.f32.mrb[0].mxu0
    %v964 = vadd.f32 %v851, %v963
    %v965 = vpop.f32.mrb[0].mxu0
    %v966 = vadd.f32 %v853, %v965
    %v967 = vpop.f32.mrb[0].mxu0
    %v968 = vadd.f32 %v855, %v967
    %969 = vdwg.mxu0
    %v970 = vlaneseq
    %v971 = vand.u32 %v970, 127
    %v972 = vadd.s32 %v971, 128
    %s973 = smul.u32 0, 256
    %v974 = vstv %s973
    %v975 = vadd.s32 %v971, %v974
    %v976 = vadd.s32 %v972, %v974
    %vm977 = vcmp.lt.s32.totalorder %v975, 196
    %vm978 = vcmp.lt.s32.totalorder %v976, 196
    %v979 = vsel %vm977, 1, 0
    %v980 = vsel %vm978, 1, 0
    %vm981 = vcmp.eq.s32.totalorder %v979, 1
    %vm982 = vcmp.eq.s32.totalorder %v980, 1
    %v983 = vsel %vm981, %v892, 0.0
    %v984 = vsel %vm982, %v894, 0.0
    %v985 = vsel %vm981, %v896, 0.0
    %v986 = vsel %vm982, %v898, 0.0
    %v987 = vsel %vm981, %v902, 0.0
    %v988 = vsel %vm982, %v904, 0.0
    %v989 = vsel %vm981, %v906, 0.0
    %v990 = vsel %vm982, %v908, 0.0
    %v991 = vsel %vm981, %v912, 0.0
    %v992 = vsel %vm982, %v914, 0.0
    %v993 = vsel %vm981, %v916, 0.0
    %v994 = vsel %vm982, %v918, 0.0
    %v995 = vsel %vm981, %v922, 0.0
    %v996 = vsel %vm982, %v924, 0.0
    %v997 = vsel %vm981, %v926, 0.0
    %v998 = vsel %vm982, %v928, 0.0
    %v999 = vsel %vm981, %v932, 0.0
    %v1000 = vsel %vm982, %v934, 0.0
    %v1001 = vsel %vm981, %v936, 0.0
    %v1002 = vsel %vm982, %v938, 0.0
    %v1003 = vsel %vm981, %v942, 0.0
    %v1004 = vsel %vm982, %v944, 0.0
    %v1005 = vsel %vm981, %v946, 0.0
    %v1006 = vsel %vm982, %v948, 0.0
    %v1007 = vsel %vm981, %v952, 0.0
    %v1008 = vsel %vm982, %v954, 0.0
    %v1009 = vsel %vm981, %v956, 0.0
    %v1010 = vsel %vm982, %v958, 0.0
    %v1011 = vsel %vm981, %v962, 0.0
    %v1012 = vsel %vm982, %v964, 0.0
    %v1013 = vsel %vm981, %v966, 0.0
    %v1014 = vsel %vm982, %v968, 0.0
    %v1015 = vld [vmem:[#allocation2] sm:$0xff]
    %v1016 = vld [vmem:[#allocation2 + $0x8] sm:$0xff]
    %v1017 = vld [vmem:[#allocation2 + $0x10] sm:$0xff]
    %v1018 = vld [vmem:[#allocation2 + $0x18] sm:$0xff]
    %v1019 = vld [vmem:[#allocation2 + $0x20] sm:$0xff]
    %v1020 = vld [vmem:[#allocation2 + $0x28] sm:$0xff]
    %v1021 = vld [vmem:[#allocation2 + $0x30] sm:$0xff]
    %v1022 = vld [vmem:[#allocation2 + $0x38] sm:$0xff]
    %v1023 = vld [vmem:[#allocation2 + $0x40] sm:$0xff]
    %v1024 = vld [vmem:[#allocation2 + $0x48] sm:$0xff]
    %v1025 = vld [vmem:[#allocation2 + $0x50] sm:$0xff]
    %v1026 = vld [vmem:[#allocation2 + $0x58] sm:$0xff]
    %v1027 = vld [vmem:[#allocation2 + $0x60] sm:$0xff]
    %v1028 = vld [vmem:[#allocation2 + $0x68] sm:$0xff]
    %v1029 = vld [vmem:[#allocation2 + $0x70] sm:$0xff]
    %v1030 = vld [vmem:[#allocation2 + $0x78] sm:$0xff]
    %v1031 = vadd.f32 %v983, %v984
    %1032 = vadd.xlane.f32.xlu0 %v1031
    %v1033 = vpop.xlane.xlu0 %1032
    %v1034 = vadd.f32 %v985, %v986
    %1035 = vadd.xlane.f32.xlu0 %v1034
    %v1036 = vpop.xlane.xlu0 %1035
    %v1037 = vadd.f32 %v987, %v988
    %1038 = vadd.xlane.f32.xlu0 %v1037
    %v1039 = vpop.xlane.xlu0 %1038
    %v1040 = vadd.f32 %v989, %v990
    %1041 = vadd.xlane.f32.xlu0 %v1040
    %v1042 = vpop.xlane.xlu0 %1041
    %v1043 = vadd.f32 %v991, %v992
    %1044 = vadd.xlane.f32.xlu0 %v1043
    %v1045 = vpop.xlane.xlu0 %1044
    %v1046 = vadd.f32 %v993, %v994
    %1047 = vadd.xlane.f32.xlu0 %v1046
    %v1048 = vpop.xlane.xlu0 %1047
    %v1049 = vadd.f32 %v995, %v996
    %1050 = vadd.xlane.f32.xlu0 %v1049
    %v1051 = vpop.xlane.xlu0 %1050
    %v1052 = vadd.f32 %v997, %v998
    %1053 = vadd.xlane.f32.xlu0 %v1052
    %v1054 = vpop.xlane.xlu0 %1053
    %v1055 = vadd.f32 %v999, %v1000
    %1056 = vadd.xlane.f32.xlu0 %v1055
    %v1057 = vpop.xlane.xlu0 %1056
    %v1058 = vadd.f32 %v1001, %v1002
    %1059 = vadd.xlane.f32.xlu0 %v1058
    %v1060 = vpop.xlane.xlu0 %1059
    %v1061 = vadd.f32 %v1003, %v1004
    %1062 = vadd.xlane.f32.xlu0 %v1061
    %v1063 = vpop.xlane.xlu0 %1062
    %v1064 = vadd.f32 %v1005, %v1006
    %1065 = vadd.xlane.f32.xlu0 %v1064
    %v1066 = vpop.xlane.xlu0 %1065
    %v1067 = vadd.f32 %v1007, %v1008
    %1068 = vadd.xlane.f32.xlu0 %v1067
    %v1069 = vpop.xlane.xlu0 %1068
    %v1070 = vadd.f32 %v1009, %v1010
    %1071 = vadd.xlane.f32.xlu0 %v1070
    %v1072 = vpop.xlane.xlu0 %1071
    %v1073 = vadd.f32 %v1011, %v1012
    %1074 = vadd.xlane.f32.xlu0 %v1073
    %v1075 = vpop.xlane.xlu0 %1074
    %v1076 = vadd.f32 %v1013, %v1014
    %1077 = vadd.xlane.f32.xlu0 %v1076
    %v1078 = vpop.xlane.xlu0 %1077
    %v1079 = vadd.f32 %v1015, %v1033
    %v1080 = vadd.f32 %v1016, %v1036
    %v1081 = vadd.f32 %v1017, %v1039
    %v1082 = vadd.f32 %v1018, %v1042
    %v1083 = vadd.f32 %v1019, %v1045
    %v1084 = vadd.f32 %v1020, %v1048
    %v1085 = vadd.f32 %v1021, %v1051
    %v1086 = vadd.f32 %v1022, %v1054
    %v1087 = vadd.f32 %v1023, %v1057
    %v1088 = vadd.f32 %v1024, %v1060
    %v1089 = vadd.f32 %v1025, %v1063
    %v1090 = vadd.f32 %v1026, %v1066
    %v1091 = vadd.f32 %v1027, %v1069
    %v1092 = vadd.f32 %v1028, %v1072
    %v1093 = vadd.f32 %v1029, %v1075
    %v1094 = vadd.f32 %v1030, %v1078
    %vm1095 = vcmask 7168
    %1096 = vst.msk [vmem:[#allocation2] sm:$0xff] %vm1095, %v1079
    %1097 = vst.msk [vmem:[#allocation2 + $0x8] sm:$0xff] %vm1095, %v1080
    %1098 = vst.msk [vmem:[#allocation2 + $0x10] sm:$0xff] %vm1095, %v1081
    %1099 = vst.msk [vmem:[#allocation2 + $0x18] sm:$0xff] %vm1095, %v1082
    %1100 = vst.msk [vmem:[#allocation2 + $0x20] sm:$0xff] %vm1095, %v1083
    %1101 = vst.msk [vmem:[#allocation2 + $0x28] sm:$0xff] %vm1095, %v1084
    %1102 = vst.msk [vmem:[#allocation2 + $0x30] sm:$0xff] %vm1095, %v1085
    %1103 = vst.msk [vmem:[#allocation2 + $0x38] sm:$0xff] %vm1095, %v1086
    %1104 = vst.msk [vmem:[#allocation2 + $0x40] sm:$0xff] %vm1095, %v1087
    %1105 = vst.msk [vmem:[#allocation2 + $0x48] sm:$0xff] %vm1095, %v1088
    %1106 = vst.msk [vmem:[#allocation2 + $0x50] sm:$0xff] %vm1095, %v1089
    %1107 = vst.msk [vmem:[#allocation2 + $0x58] sm:$0xff] %vm1095, %v1090
    %1108 = vst.msk [vmem:[#allocation2 + $0x60] sm:$0xff] %vm1095, %v1091
    %1109 = vst.msk [vmem:[#allocation2 + $0x68] sm:$0xff] %vm1095, %v1092
    %1110 = vst.msk [vmem:[#allocation2 + $0x70] sm:$0xff] %vm1095, %v1093
    %1111 = vst.msk [vmem:[#allocation2 + $0x78] sm:$0xff] %vm1095, %v1094
    %v1112 = vld [vmem:[#allocation3] sm:$0xff]
    %v1113 = vld [vmem:[#allocation3 + $0x8] sm:$0xff]
    %v1114 = vld [vmem:[#allocation3 + $0x10] sm:$0xff]
    %v1115 = vld [vmem:[#allocation3 + $0x18] sm:$0xff]
    %v1116 = vld [vmem:[#allocation3 + $0x20] sm:$0xff]
    %v1117 = vld [vmem:[#allocation3 + $0x28] sm:$0xff]
    %v1118 = vld [vmem:[#allocation3 + $0x30] sm:$0xff]
    %v1119 = vld [vmem:[#allocation3 + $0x38] sm:$0xff]
    %v1120 = vld [vmem:[#allocation3 + $0x40] sm:$0xff]
    %v1121 = vld [vmem:[#allocation3 + $0x48] sm:$0xff]
    %v1122 = vld [vmem:[#allocation3 + $0x50] sm:$0xff]
    %v1123 = vld [vmem:[#allocation3 + $0x58] sm:$0xff]
    %v1124 = vld [vmem:[#allocation3 + $0x60] sm:$0xff]
    %v1125 = vld [vmem:[#allocation3 + $0x68] sm:$0xff]
    %v1126 = vld [vmem:[#allocation3 + $0x70] sm:$0xff]
    %v1127 = vld [vmem:[#allocation3 + $0x78] sm:$0xff]
    %v1128 = vmul.f32 %v983, %v983
    %v1129 = vmul.f32 %v984, %v984
    %v1130 = vmul.f32 %v985, %v985
    %v1131 = vmul.f32 %v986, %v986
    %v1132 = vmul.f32 %v987, %v987
    %v1133 = vmul.f32 %v988, %v988
    %v1134 = vmul.f32 %v989, %v989
    %v1135 = vmul.f32 %v990, %v990
    %v1136 = vmul.f32 %v991, %v991
    %v1137 = vmul.f32 %v992, %v992
    %v1138 = vmul.f32 %v993, %v993
    %v1139 = vmul.f32 %v994, %v994
    %v1140 = vmul.f32 %v995, %v995
    %v1141 = vmul.f32 %v996, %v996
    %v1142 = vmul.f32 %v997, %v997
    %v1143 = vmul.f32 %v998, %v998
    %v1144 = vmul.f32 %v999, %v999
    %v1145 = vmul.f32 %v1000, %v1000
    %v1146 = vmul.f32 %v1001, %v1001
    %v1147 = vmul.f32 %v1002, %v1002
    %v1148 = vmul.f32 %v1003, %v1003
    %v1149 = vmul.f32 %v1004, %v1004
    %v1150 = vmul.f32 %v1005, %v1005
    %v1151 = vmul.f32 %v1006, %v1006
    %v1152 = vmul.f32 %v1007, %v1007
    %v1153 = vmul.f32 %v1008, %v1008
    %v1154 = vmul.f32 %v1009, %v1009
    %v1155 = vmul.f32 %v1010, %v1010
    %v1156 = vmul.f32 %v1011, %v1011
    %v1157 = vmul.f32 %v1012, %v1012
    %v1158 = vmul.f32 %v1013, %v1013
    %v1159 = vmul.f32 %v1014, %v1014
    %v1160 = vadd.f32 %v1128, %v1129
    %1161 = vadd.xlane.f32.xlu0 %v1160
    %v1162 = vpop.xlane.xlu0 %1161
    %v1163 = vadd.f32 %v1130, %v1131
    %1164 = vadd.xlane.f32.xlu0 %v1163
    %v1165 = vpop.xlane.xlu0 %1164
    %v1166 = vadd.f32 %v1132, %v1133
    %1167 = vadd.xlane.f32.xlu0 %v1166
    %v1168 = vpop.xlane.xlu0 %1167
    %v1169 = vadd.f32 %v1134, %v1135
    %1170 = vadd.xlane.f32.xlu0 %v1169
    %v1171 = vpop.xlane.xlu0 %1170
    %v1172 = vadd.f32 %v1136, %v1137
    %1173 = vadd.xlane.f32.xlu0 %v1172
    %v1174 = vpop.xlane.xlu0 %1173
    %v1175 = vadd.f32 %v1138, %v1139
    %1176 = vadd.xlane.f32.xlu0 %v1175
    %v1177 = vpop.xlane.xlu0 %1176
    %v1178 = vadd.f32 %v1140, %v1141
    %1179 = vadd.xlane.f32.xlu0 %v1178
    %v1180 = vpop.xlane.xlu0 %1179
    %v1181 = vadd.f32 %v1142, %v1143
    %1182 = vadd.xlane.f32.xlu0 %v1181
    %v1183 = vpop.xlane.xlu0 %1182
    %v1184 = vadd.f32 %v1144, %v1145
    %1185 = vadd.xlane.f32.xlu0 %v1184
    %v1186 = vpop.xlane.xlu0 %1185
    %v1187 = vadd.f32 %v1146, %v1147
    %1188 = vadd.xlane.f32.xlu0 %v1187
    %v1189 = vpop.xlane.xlu0 %1188
    %v1190 = vadd.f32 %v1148, %v1149
    %1191 = vadd.xlane.f32.xlu0 %v1190
    %v1192 = vpop.xlane.xlu0 %1191
    %v1193 = vadd.f32 %v1150, %v1151
    %1194 = vadd.xlane.f32.xlu0 %v1193
    %v1195 = vpop.xlane.xlu0 %1194
    %v1196 = vadd.f32 %v1152, %v1153
    %1197 = vadd.xlane.f32.xlu0 %v1196
    %v1198 = vpop.xlane.xlu0 %1197
    %v1199 = vadd.f32 %v1154, %v1155
    %1200 = vadd.xlane.f32.xlu0 %v1199
    %v1201 = vpop.xlane.xlu0 %1200
    %v1202 = vadd.f32 %v1156, %v1157
    %1203 = vadd.xlane.f32.xlu0 %v1202
    %v1204 = vpop.xlane.xlu0 %1203
    %v1205 = vadd.f32 %v1158, %v1159
    %1206 = vadd.xlane.f32.xlu0 %v1205
    %v1207 = vpop.xlane.xlu0 %1206
    %v1208 = vadd.f32 %v1112, %v1162
    %v1209 = vadd.f32 %v1113, %v1165
    %v1210 = vadd.f32 %v1114, %v1168
    %v1211 = vadd.f32 %v1115, %v1171
    %v1212 = vadd.f32 %v1116, %v1174
    %v1213 = vadd.f32 %v1117, %v1177
    %v1214 = vadd.f32 %v1118, %v1180
    %v1215 = vadd.f32 %v1119, %v1183
    %v1216 = vadd.f32 %v1120, %v1186
    %v1217 = vadd.f32 %v1121, %v1189
    %v1218 = vadd.f32 %v1122, %v1192
    %v1219 = vadd.f32 %v1123, %v1195
    %v1220 = vadd.f32 %v1124, %v1198
    %v1221 = vadd.f32 %v1125, %v1201
    %v1222 = vadd.f32 %v1126, %v1204
    %v1223 = vadd.f32 %v1127, %v1207
    %1224 = vst.msk [vmem:[#allocation3] sm:$0xff] %vm1095, %v1208
    %1225 = vst.msk [vmem:[#allocation3 + $0x8] sm:$0xff] %vm1095, %v1209
    %1226 = vst.msk [vmem:[#allocation3 + $0x10] sm:$0xff] %vm1095, %v1210
    %1227 = vst.msk [vmem:[#allocation3 + $0x18] sm:$0xff] %vm1095, %v1211
    %1228 = vst.msk [vmem:[#allocation3 + $0x20] sm:$0xff] %vm1095, %v1212
    %1229 = vst.msk [vmem:[#allocation3 + $0x28] sm:$0xff] %vm1095, %v1213
    %1230 = vst.msk [vmem:[#allocation3 + $0x30] sm:$0xff] %vm1095, %v1214
    %1231 = vst.msk [vmem:[#allocation3 + $0x38] sm:$0xff] %vm1095, %v1215
    %1232 = vst.msk [vmem:[#allocation3 + $0x40] sm:$0xff] %vm1095, %v1216
    %1233 = vst.msk [vmem:[#allocation3 + $0x48] sm:$0xff] %vm1095, %v1217
    %1234 = vst.msk [vmem:[#allocation3 + $0x50] sm:$0xff] %vm1095, %v1218
    %1235 = vst.msk [vmem:[#allocation3 + $0x58] sm:$0xff] %vm1095, %v1219
    %1236 = vst.msk [vmem:[#allocation3 + $0x60] sm:$0xff] %vm1095, %v1220
    %1237 = vst.msk [vmem:[#allocation3 + $0x68] sm:$0xff] %vm1095, %v1221
    %1238 = vst.msk [vmem:[#allocation3 + $0x70] sm:$0xff] %vm1095, %v1222
    %1239 = vst.msk [vmem:[#allocation3 + $0x78] sm:$0xff] %vm1095, %v1223
    %1240 = vst [vmem:[#allocation4] sm:$0xff] %v983
    %1241 = vst [vmem:[#allocation4 + $0x8] sm:$0xff] %v984
    %1242 = vst [vmem:[#allocation4 + $0x10] sm:$0xff] %v985
    %1243 = vst [vmem:[#allocation4 + $0x18] sm:$0xff] %v986
    %1244 = vst [vmem:[#allocation4 + $0x20] sm:$0xff] %v987
    %1245 = vst [vmem:[#allocation4 + $0x28] sm:$0xff] %v988
    %1246 = vst [vmem:[#allocation4 + $0x30] sm:$0xff] %v989
    %1247 = vst [vmem:[#allocation4 + $0x38] sm:$0xff] %v990
    %1248 = vst [vmem:[#allocation4 + $0x40] sm:$0xff] %v991
    %1249 = vst [vmem:[#allocation4 + $0x48] sm:$0xff] %v992
    %1250 = vst [vmem:[#allocation4 + $0x50] sm:$0xff] %v993
    %1251 = vst [vmem:[#allocation4 + $0x58] sm:$0xff] %v994
    %1252 = vst [vmem:[#allocation4 + $0x60] sm:$0xff] %v995
    %1253 = vst [vmem:[#allocation4 + $0x68] sm:$0xff] %v996
    %1254 = vst [vmem:[#allocation4 + $0x70] sm:$0xff] %v997
    %1255 = vst [vmem:[#allocation4 + $0x78] sm:$0xff] %v998
    %1256 = vst [vmem:[#allocation4 + $0x80] sm:$0xff] %v999
    %1257 = vst [vmem:[#allocation4 + $0x88] sm:$0xff] %v1000
    %1258 = vst [vmem:[#allocation4 + $0x90] sm:$0xff] %v1001
    %1259 = vst [vmem:[#allocation4 + $0x98] sm:$0xff] %v1002
    %1260 = vst [vmem:[#allocation4 + $0xa0] sm:$0xff] %v1003
    %1261 = vst [vmem:[#allocation4 + $0xa8] sm:$0xff] %v1004
    %1262 = vst [vmem:[#allocation4 + $0xb0] sm:$0xff] %v1005
    %1263 = vst [vmem:[#allocation4 + $0xb8] sm:$0xff] %v1006
    %1264 = vst [vmem:[#allocation4 + $0xc0] sm:$0xff] %v1007
    %1265 = vst [vmem:[#allocation4 + $0xc8] sm:$0xff] %v1008
    %1266 = vst [vmem:[#allocation4 + $0xd0] sm:$0xff] %v1009
    %1267 = vst [vmem:[#allocation4 + $0xd8] sm:$0xff] %v1010
    %1268 = vst [vmem:[#allocation4 + $0xe0] sm:$0xff] %v1011
    %1269 = vst [vmem:[#allocation4 + $0xe8] sm:$0xff] %v1012
    %1270 = vst [vmem:[#allocation4 + $0xf0] sm:$0xff] %v1013
    %1271 = vst [vmem:[#allocation4 + $0xf8] sm:$0xff] %v1014
    // Predicated region
    $region22: #{tpu_custom_call.1} parent=1 // pred_check
      %p1272 = pneg %p18
    $region23: #{tpu_custom_call.1} parent=1 // pred_check_branch
      %1274 = sbr.rel (%p1272) target = $region25
    $region24: #{tpu_custom_call.1} parent=1 // pred_region
      %v1275 = vld [vmem:[#allocation2] sm:$0xff]
      %v1276 = vld [vmem:[#allocation2 + $0x8] sm:$0xff]
      %v1277 = vld [vmem:[#allocation2 + $0x10] sm:$0xff]
      %v1278 = vld [vmem:[#allocation2 + $0x18] sm:$0xff]
      %v1279 = vld [vmem:[#allocation2 + $0x20] sm:$0xff]
      %v1280 = vld [vmem:[#allocation2 + $0x28] sm:$0xff]
      %v1281 = vld [vmem:[#allocation2 + $0x30] sm:$0xff]
      %v1282 = vld [vmem:[#allocation2 + $0x38] sm:$0xff]
      %v1283 = vld [vmem:[#allocation2 + $0x40] sm:$0xff]
      %v1284 = vld [vmem:[#allocation2 + $0x48] sm:$0xff]
      %v1285 = vld [vmem:[#allocation2 + $0x50] sm:$0xff]
      %v1286 = vld [vmem:[#allocation2 + $0x58] sm:$0xff]
      %v1287 = vld [vmem:[#allocation2 + $0x60] sm:$0xff]
      %v1288 = vld [vmem:[#allocation2 + $0x68] sm:$0xff]
      %v1289 = vld [vmem:[#allocation2 + $0x70] sm:$0xff]
      %v1290 = vld [vmem:[#allocation2 + $0x78] sm:$0xff]
      %v1291 = vmul.f32 %v1275, 0.0051020407
      %v1292 = vmul.f32 %v1276, 0.0051020407
      %v1293 = vmul.f32 %v1277, 0.0051020407
      %v1294 = vmul.f32 %v1278, 0.0051020407
      %v1295 = vmul.f32 %v1279, 0.0051020407
      %v1296 = vmul.f32 %v1280, 0.0051020407
      %v1297 = vmul.f32 %v1281, 0.0051020407
      %v1298 = vmul.f32 %v1282, 0.0051020407
      %v1299 = vmul.f32 %v1283, 0.0051020407
      %v1300 = vmul.f32 %v1284, 0.0051020407
      %v1301 = vmul.f32 %v1285, 0.0051020407
      %v1302 = vmul.f32 %v1286, 0.0051020407
      %v1303 = vmul.f32 %v1287, 0.0051020407
      %v1304 = vmul.f32 %v1288, 0.0051020407
      %v1305 = vmul.f32 %v1289, 0.0051020407
      %v1306 = vmul.f32 %v1290, 0.0051020407
      %v1307 = vld [vmem:[#allocation3] sm:$0xff]
      %v1308 = vld [vmem:[#allocation3 + $0x8] sm:$0xff]
      %v1309 = vld [vmem:[#allocation3 + $0x10] sm:$0xff]
      %v1310 = vld [vmem:[#allocation3 + $0x18] sm:$0xff]
      %v1311 = vld [vmem:[#allocation3 + $0x20] sm:$0xff]
      %v1312 = vld [vmem:[#allocation3 + $0x28] sm:$0xff]
      %v1313 = vld [vmem:[#allocation3 + $0x30] sm:$0xff]
      %v1314 = vld [vmem:[#allocation3 + $0x38] sm:$0xff]
      %v1315 = vld [vmem:[#allocation3 + $0x40] sm:$0xff]
      %v1316 = vld [vmem:[#allocation3 + $0x48] sm:$0xff]
      %v1317 = vld [vmem:[#allocation3 + $0x50] sm:$0xff]
      %v1318 = vld [vmem:[#allocation3 + $0x58] sm:$0xff]
      %v1319 = vld [vmem:[#allocation3 + $0x60] sm:$0xff]
      %v1320 = vld [vmem:[#allocation3 + $0x68] sm:$0xff]
      %v1321 = vld [vmem:[#allocation3 + $0x70] sm:$0xff]
      %v1322 = vld [vmem:[#allocation3 + $0x78] sm:$0xff]
      %v1323 = vmul.f32 %v1307, 0.0051020407
      %v1324 = vmul.f32 %v1308, 0.0051020407
      %v1325 = vmul.f32 %v1309, 0.0051020407
      %v1326 = vmul.f32 %v1310, 0.0051020407
      %v1327 = vmul.f32 %v1311, 0.0051020407
      %v1328 = vmul.f32 %v1312, 0.0051020407
      %v1329 = vmul.f32 %v1313, 0.0051020407
      %v1330 = vmul.f32 %v1314, 0.0051020407
      %v1331 = vmul.f32 %v1315, 0.0051020407
      %v1332 = vmul.f32 %v1316, 0.0051020407
      %v1333 = vmul.f32 %v1317, 0.0051020407
      %v1334 = vmul.f32 %v1318, 0.0051020407
      %v1335 = vmul.f32 %v1319, 0.0051020407
      %v1336 = vmul.f32 %v1320, 0.0051020407
      %v1337 = vmul.f32 %v1321, 0.0051020407
      %v1338 = vmul.f32 %v1322, 0.0051020407
      %v1339 = vmul.f32 %v1291, %v1291
      %v1340 = vmul.f32 %v1292, %v1292
      %v1341 = vmul.f32 %v1293, %v1293
      %v1342 = vmul.f32 %v1294, %v1294
      %v1343 = vmul.f32 %v1295, %v1295
      %v1344 = vmul.f32 %v1296, %v1296
      %v1345 = vmul.f32 %v1297, %v1297
      %v1346 = vmul.f32 %v1298, %v1298
      %v1347 = vmul.f32 %v1299, %v1299
      %v1348 = vmul.f32 %v1300, %v1300
      %v1349 = vmul.f32 %v1301, %v1301
      %v1350 = vmul.f32 %v1302, %v1302
      %v1351 = vmul.f32 %v1303, %v1303
      %v1352 = vmul.f32 %v1304, %v1304
      %v1353 = vmul.f32 %v1305, %v1305
      %v1354 = vmul.f32 %v1306, %v1306
      %v1355 = vsub.f32 %v1323, %v1339
      %v1356 = vsub.f32 %v1324, %v1340
      %v1357 = vsub.f32 %v1325, %v1341
      %v1358 = vsub.f32 %v1326, %v1342
      %v1359 = vsub.f32 %v1327, %v1343
      %v1360 = vsub.f32 %v1328, %v1344
      %v1361 = vsub.f32 %v1329, %v1345
      %v1362 = vsub.f32 %v1330, %v1346
      %v1363 = vsub.f32 %v1331, %v1347
      %v1364 = vsub.f32 %v1332, %v1348
      %v1365 = vsub.f32 %v1333, %v1349
      %v1366 = vsub.f32 %v1334, %v1350
      %v1367 = vsub.f32 %v1335, %v1351
      %v1368 = vsub.f32 %v1336, %v1352
      %v1369 = vsub.f32 %v1337, %v1353
      %v1370 = vsub.f32 %v1338, %v1354
      %v1371 = vadd.f32 %v1355, 0.001
      %v1372 = vadd.f32 %v1356, 0.001
      %v1373 = vadd.f32 %v1357, 0.001
      %v1374 = vadd.f32 %v1358, 0.001
      %v1375 = vadd.f32 %v1359, 0.001
      %v1376 = vadd.f32 %v1360, 0.001
      %v1377 = vadd.f32 %v1361, 0.001
      %v1378 = vadd.f32 %v1362, 0.001
      %v1379 = vadd.f32 %v1363, 0.001
      %v1380 = vadd.f32 %v1364, 0.001
      %v1381 = vadd.f32 %v1365, 0.001
      %v1382 = vadd.f32 %v1366, 0.001
      %v1383 = vadd.f32 %v1367, 0.001
      %v1384 = vadd.f32 %v1368, 0.001
      %v1385 = vadd.f32 %v1369, 0.001
      %v1386 = vadd.f32 %v1370, 0.001
      %v1387 = vrsqrt.pop %v1371
      %v1388 = vrsqrt.pop %v1372
      %v1389 = vrsqrt.pop %v1373
      %v1390 = vrsqrt.pop %v1374
      %v1391 = vrsqrt.pop %v1375
      %v1392 = vrsqrt.pop %v1376
      %v1393 = vrsqrt.pop %v1377
      %v1394 = vrsqrt.pop %v1378
      %v1395 = vrsqrt.pop %v1379
      %v1396 = vrsqrt.pop %v1380
      %v1397 = vrsqrt.pop %v1381
      %v1398 = vrsqrt.pop %v1382
      %v1399 = vrsqrt.pop %v1383
      %v1400 = vrsqrt.pop %v1384
      %v1401 = vrsqrt.pop %v1385
      %v1402 = vrsqrt.pop %v1386
      %v1403 = vld [vmem:[%s2] sm:$0xff]
      %v1404 = vld [vmem:[%s2 + $0x8] sm:$0xff]
      %v1405 = vld [vmem:[%s2 + $0x10] sm:$0xff]
      %v1406 = vld [vmem:[%s2 + $0x18] sm:$0xff]
      %v1407 = vld [vmem:[%s2 + $0x20] sm:$0xff]
      %v1408 = vld [vmem:[%s2 + $0x28] sm:$0xff]
      %v1409 = vld [vmem:[%s2 + $0x30] sm:$0xff]
      %v1410 = vld [vmem:[%s2 + $0x38] sm:$0xff]
      %v1411 = vld [vmem:[%s2 + $0x40] sm:$0xff]
      %v1412 = vld [vmem:[%s2 + $0x48] sm:$0xff]
      %v1413 = vld [vmem:[%s2 + $0x50] sm:$0xff]
      %v1414 = vld [vmem:[%s2 + $0x58] sm:$0xff]
      %v1415 = vld [vmem:[%s2 + $0x60] sm:$0xff]
      %v1416 = vld [vmem:[%s2 + $0x68] sm:$0xff]
      %v1417 = vld [vmem:[%s2 + $0x70] sm:$0xff]
      %v1418 = vld [vmem:[%s2 + $0x78] sm:$0xff]
      %v1419 = vmul.f32 %v1403, %v1387
      %v1420 = vmul.f32 %v1404, %v1388
      %v1421 = vmul.f32 %v1405, %v1389
      %v1422 = vmul.f32 %v1406, %v1390
      %v1423 = vmul.f32 %v1407, %v1391
      %v1424 = vmul.f32 %v1408, %v1392
      %v1425 = vmul.f32 %v1409, %v1393
      %v1426 = vmul.f32 %v1410, %v1394
      %v1427 = vmul.f32 %v1411, %v1395
      %v1428 = vmul.f32 %v1412, %v1396
      %v1429 = vmul.f32 %v1413, %v1397
      %v1430 = vmul.f32 %v1414, %v1398
      %v1431 = vmul.f32 %v1415, %v1399
      %v1432 = vmul.f32 %v1416, %v1400
      %v1433 = vmul.f32 %v1417, %v1401
      %v1434 = vmul.f32 %v1418, %v1402
      %v1435 = vld [vmem:[%s3] sm:$0xff]
      %v1436 = vld [vmem:[%s3 + $0x8] sm:$0xff]
      %v1437 = vld [vmem:[%s3 + $0x10] sm:$0xff]
      %v1438 = vld [vmem:[%s3 + $0x18] sm:$0xff]
      %v1439 = vld [vmem:[%s3 + $0x20] sm:$0xff]
      %v1440 = vld [vmem:[%s3 + $0x28] sm:$0xff]
      %v1441 = vld [vmem:[%s3 + $0x30] sm:$0xff]
      %v1442 = vld [vmem:[%s3 + $0x38] sm:$0xff]
      %v1443 = vld [vmem:[%s3 + $0x40] sm:$0xff]
      %v1444 = vld [vmem:[%s3 + $0x48] sm:$0xff]
      %v1445 = vld [vmem:[%s3 + $0x50] sm:$0xff]
      %v1446 = vld [vmem:[%s3 + $0x58] sm:$0xff]
      %v1447 = vld [vmem:[%s3 + $0x60] sm:$0xff]
      %v1448 = vld [vmem:[%s3 + $0x68] sm:$0xff]
      %v1449 = vld [vmem:[%s3 + $0x70] sm:$0xff]
      %v1450 = vld [vmem:[%s3 + $0x78] sm:$0xff]
      %v1451 = vmul.f32 %v1291, %v1419
      %v1452 = vmul.f32 %v1292, %v1420
      %v1453 = vmul.f32 %v1293, %v1421
      %v1454 = vmul.f32 %v1294, %v1422
      %v1455 = vmul.f32 %v1295, %v1423
      %v1456 = vmul.f32 %v1296, %v1424
      %v1457 = vmul.f32 %v1297, %v1425
      %v1458 = vmul.f32 %v1298, %v1426
      %v1459 = vmul.f32 %v1299, %v1427
      %v1460 = vmul.f32 %v1300, %v1428
      %v1461 = vmul.f32 %v1301, %v1429
      %v1462 = vmul.f32 %v1302, %v1430
      %v1463 = vmul.f32 %v1303, %v1431
      %v1464 = vmul.f32 %v1304, %v1432
      %v1465 = vmul.f32 %v1305, %v1433
      %v1466 = vmul.f32 %v1306, %v1434
      %v1467 = vsub.f32 %v1435, %v1451
      %v1468 = vsub.f32 %v1436, %v1452
      %v1469 = vsub.f32 %v1437, %v1453
      %v1470 = vsub.f32 %v1438, %v1454
      %v1471 = vsub.f32 %v1439, %v1455
      %v1472 = vsub.f32 %v1440, %v1456
      %v1473 = vsub.f32 %v1441, %v1457
      %v1474 = vsub.f32 %v1442, %v1458
      %v1475 = vsub.f32 %v1443, %v1459
      %v1476 = vsub.f32 %v1444, %v1460
      %v1477 = vsub.f32 %v1445, %v1461
      %v1478 = vsub.f32 %v1446, %v1462
      %v1479 = vsub.f32 %v1447, %v1463
      %v1480 = vsub.f32 %v1448, %v1464
      %v1481 = vsub.f32 %v1449, %v1465
      %v1482 = vsub.f32 %v1450, %v1466
      %v1483 = vld [vmem:[#allocation4] sm:$0xff]
      %v1484 = vld [vmem:[#allocation4 + $0x8] sm:$0xff]
      %v1485 = vld [vmem:[#allocation4 + $0x10] sm:$0xff]
      %v1486 = vld [vmem:[#allocation4 + $0x18] sm:$0xff]
      %v1487 = vld [vmem:[#allocation4 + $0x20] sm:$0xff]
      %v1488 = vld [vmem:[#allocation4 + $0x28] sm:$0xff]
      %v1489 = vld [vmem:[#allocation4 + $0x30] sm:$0xff]
      %v1490 = vld [vmem:[#allocation4 + $0x38] sm:$0xff]
      %v1491 = vld [vmem:[#allocation4 + $0x40] sm:$0xff]
      %v1492 = vld [vmem:[#allocation4 + $0x48] sm:$0xff]
      %v1493 = vld [vmem:[#allocation4 + $0x50] sm:$0xff]
      %v1494 = vld [vmem:[#allocation4 + $0x58] sm:$0xff]
      %v1495 = vld [vmem:[#allocation4 + $0x60] sm:$0xff]
      %v1496 = vld [vmem:[#allocation4 + $0x68] sm:$0xff]
      %v1497 = vld [vmem:[#allocation4 + $0x70] sm:$0xff]
      %v1498 = vld [vmem:[#allocation4 + $0x78] sm:$0xff]
      %v1499 = vld [vmem:[#allocation4 + $0x80] sm:$0xff]
      %v1500 = vld [vmem:[#allocation4 + $0x88] sm:$0xff]
      %v1501 = vld [vmem:[#allocation4 + $0x90] sm:$0xff]
      %v1502 = vld [vmem:[#allocation4 + $0x98] sm:$0xff]
      %v1503 = vld [vmem:[#allocation4 + $0xa0] sm:$0xff]
      %v1504 = vld [vmem:[#allocation4 + $0xa8] sm:$0xff]
      %v1505 = vld [vmem:[#allocation4 + $0xb0] sm:$0xff]
      %v1506 = vld [vmem:[#allocation4 + $0xb8] sm:$0xff]
      %v1507 = vld [vmem:[#allocation4 + $0xc0] sm:$0xff]
      %v1508 = vld [vmem:[#allocation4 + $0xc8] sm:$0xff]
      %v1509 = vld [vmem:[#allocation4 + $0xd0] sm:$0xff]
      %v1510 = vld [vmem:[#allocation4 + $0xd8] sm:$0xff]
      %v1511 = vld [vmem:[#allocation4 + $0xe0] sm:$0xff]
      %v1512 = vld [vmem:[#allocation4 + $0xe8] sm:$0xff]
      %v1513 = vld [vmem:[#allocation4 + $0xf0] sm:$0xff]
      %v1514 = vld [vmem:[#allocation4 + $0xf8] sm:$0xff]
      %1516 = vset.pattern.permute.xlu0 0
      %1517 = vperm.xlu0 %1516, %v1419
      %v1518 = vpop.permute.xlu0 %1517
      %1521 = vset.pattern.permute.xlu0 0
      %1522 = vperm.xlu0 %1521, %v1420
      %v1523 = vpop.permute.xlu0 %1522
      %1526 = vset.pattern.permute.xlu0 0
      %1527 = vperm.xlu0 %1526, %v1421
      %v1528 = vpop.permute.xlu0 %1527
      %1531 = vset.pattern.permute.xlu0 0
      %1532 = vperm.xlu0 %1531, %v1422
      %v1533 = vpop.permute.xlu0 %1532
      %1536 = vset.pattern.permute.xlu0 0
      %1537 = vperm.xlu0 %1536, %v1423
      %v1538 = vpop.permute.xlu0 %1537
      %1541 = vset.pattern.permute.xlu0 0
      %1542 = vperm.xlu0 %1541, %v1424
      %v1543 = vpop.permute.xlu0 %1542
      %1546 = vset.pattern.permute.xlu0 0
      %1547 = vperm.xlu0 %1546, %v1425
      %v1548 = vpop.permute.xlu0 %1547
      %1551 = vset.pattern.permute.xlu0 0
      %1552 = vperm.xlu0 %1551, %v1426
      %v1553 = vpop.permute.xlu0 %1552
      %1556 = vset.pattern.permute.xlu0 0
      %1557 = vperm.xlu0 %1556, %v1427
      %v1558 = vpop.permute.xlu0 %1557
      %1561 = vset.pattern.permute.xlu0 0
      %1562 = vperm.xlu0 %1561, %v1428
      %v1563 = vpop.permute.xlu0 %1562
      %1566 = vset.pattern.permute.xlu0 0
      %1567 = vperm.xlu0 %1566, %v1429
      %v1568 = vpop.permute.xlu0 %1567
      %1571 = vset.pattern.permute.xlu0 0
      %1572 = vperm.xlu0 %1571, %v1430
      %v1573 = vpop.permute.xlu0 %1572
      %1576 = vset.pattern.permute.xlu0 0
      %1577 = vperm.xlu0 %1576, %v1431
      %v1578 = vpop.permute.xlu0 %1577
      %1581 = vset.pattern.permute.xlu0 0
      %1582 = vperm.xlu0 %1581, %v1432
      %v1583 = vpop.permute.xlu0 %1582
      %1586 = vset.pattern.permute.xlu0 0
      %1587 = vperm.xlu0 %1586, %v1433
      %v1588 = vpop.permute.xlu0 %1587
      %1591 = vset.pattern.permute.xlu0 0
      %1592 = vperm.xlu0 %1591, %v1434
      %v1593 = vpop.permute.xlu0 %1592
      %v1595 = vmul.f32 %v1483, %v1518
      %v1596 = vmul.f32 %v1484, %v1518
      %v1597 = vmul.f32 %v1485, %v1523
      %v1598 = vmul.f32 %v1486, %v1523
      %v1599 = vmul.f32 %v1487, %v1528
      %v1600 = vmul.f32 %v1488, %v1528
      %v1601 = vmul.f32 %v1489, %v1533
      %v1602 = vmul.f32 %v1490, %v1533
      %v1603 = vmul.f32 %v1491, %v1538
      %v1604 = vmul.f32 %v1492, %v1538
      %v1605 = vmul.f32 %v1493, %v1543
      %v1606 = vmul.f32 %v1494, %v1543
      %v1607 = vmul.f32 %v1495, %v1548
      %v1608 = vmul.f32 %v1496, %v1548
      %v1609 = vmul.f32 %v1497, %v1553
      %v1610 = vmul.f32 %v1498, %v1553
      %v1611 = vmul.f32 %v1499, %v1558
      %v1612 = vmul.f32 %v1500, %v1558
      %v1613 = vmul.f32 %v1501, %v1563
      %v1614 = vmul.f32 %v1502, %v1563
      %v1615 = vmul.f32 %v1503, %v1568
      %v1616 = vmul.f32 %v1504, %v1568
      %v1617 = vmul.f32 %v1505, %v1573
      %v1618 = vmul.f32 %v1506, %v1573
      %v1619 = vmul.f32 %v1507, %v1578
      %v1620 = vmul.f32 %v1508, %v1578
      %v1621 = vmul.f32 %v1509, %v1583
      %v1622 = vmul.f32 %v1510, %v1583
      %v1623 = vmul.f32 %v1511, %v1588
      %v1624 = vmul.f32 %v1512, %v1588
      %v1625 = vmul.f32 %v1513, %v1593
      %v1626 = vmul.f32 %v1514, %v1593
      %1628 = vset.pattern.permute.xlu0 0
      %1629 = vperm.xlu0 %1628, %v1467
      %v1630 = vpop.permute.xlu0 %1629
      %1633 = vset.pattern.permute.xlu0 0
      %1634 = vperm.xlu0 %1633, %v1468
      %v1635 = vpop.permute.xlu0 %1634
      %1638 = vset.pattern.permute.xlu0 0
      %1639 = vperm.xlu0 %1638, %v1469
      %v1640 = vpop.permute.xlu0 %1639
      %1643 = vset.pattern.permute.xlu0 0
      %1644 = vperm.xlu0 %1643, %v1470
      %v1645 = vpop.permute.xlu0 %1644
      %1648 = vset.pattern.permute.xlu0 0
      %1649 = vperm.xlu0 %1648, %v1471
      %v1650 = vpop.permute.xlu0 %1649
      %1653 = vset.pattern.permute.xlu0 0
      %1654 = vperm.xlu0 %1653, %v1472
      %v1655 = vpop.permute.xlu0 %1654
      %1658 = vset.pattern.permute.xlu0 0
      %1659 = vperm.xlu0 %1658, %v1473
      %v1660 = vpop.permute.xlu0 %1659
      %1663 = vset.pattern.permute.xlu0 0
      %1664 = vperm.xlu0 %1663, %v1474
      %v1665 = vpop.permute.xlu0 %1664
      %1668 = vset.pattern.permute.xlu0 0
      %1669 = vperm.xlu0 %1668, %v1475
      %v1670 = vpop.permute.xlu0 %1669
      %1673 = vset.pattern.permute.xlu0 0
      %1674 = vperm.xlu0 %1673, %v1476
      %v1675 = vpop.permute.xlu0 %1674
      %1678 = vset.pattern.permute.xlu0 0
      %1679 = vperm.xlu0 %1678, %v1477
      %v1680 = vpop.permute.xlu0 %1679
      %1683 = vset.pattern.permute.xlu0 0
      %1684 = vperm.xlu0 %1683, %v1478
      %v1685 = vpop.permute.xlu0 %1684
      %1688 = vset.pattern.permute.xlu0 0
      %1689 = vperm.xlu0 %1688, %v1479
      %v1690 = vpop.permute.xlu0 %1689
      %1693 = vset.pattern.permute.xlu0 0
      %1694 = vperm.xlu0 %1693, %v1480
      %v1695 = vpop.permute.xlu0 %1694
      %1698 = vset.pattern.permute.xlu0 0
      %1699 = vperm.xlu0 %1698, %v1481
      %v1700 = vpop.permute.xlu0 %1699
      %1703 = vset.pattern.permute.xlu0 0
      %1704 = vperm.xlu0 %1703, %v1482
      %v1705 = vpop.permute.xlu0 %1704
      %v1707 = vadd.f32 %v1595, %v1630
      %v1708 = vadd.f32 %v1596, %v1630
      %v1709 = vadd.f32 %v1597, %v1635
      %v1710 = vadd.f32 %v1598, %v1635
      %v1711 = vadd.f32 %v1599, %v1640
      %v1712 = vadd.f32 %v1600, %v1640
      %v1713 = vadd.f32 %v1601, %v1645
      %v1714 = vadd.f32 %v1602, %v1645
      %v1715 = vadd.f32 %v1603, %v1650
      %v1716 = vadd.f32 %v1604, %v1650
      %v1717 = vadd.f32 %v1605, %v1655
      %v1718 = vadd.f32 %v1606, %v1655
      %v1719 = vadd.f32 %v1607, %v1660
      %v1720 = vadd.f32 %v1608, %v1660
      %v1721 = vadd.f32 %v1609, %v1665
      %v1722 = vadd.f32 %v1610, %v1665
      %v1723 = vadd.f32 %v1611, %v1670
      %v1724 = vadd.f32 %v1612, %v1670
      %v1725 = vadd.f32 %v1613, %v1675
      %v1726 = vadd.f32 %v1614, %v1675
      %v1727 = vadd.f32 %v1615, %v1680
      %v1728 = vadd.f32 %v1616, %v1680
      %v1729 = vadd.f32 %v1617, %v1685
      %v1730 = vadd.f32 %v1618, %v1685
      %v1731 = vadd.f32 %v1619, %v1690
      %v1732 = vadd.f32 %v1620, %v1690
      %v1733 = vadd.f32 %v1621, %v1695
      %v1734 = vadd.f32 %v1622, %v1695
      %v1735 = vadd.f32 %v1623, %v1700
      %v1736 = vadd.f32 %v1624, %v1700
      %v1737 = vadd.f32 %v1625, %v1705
      %v1738 = vadd.f32 %v1626, %v1705
      %1739 = vst [vmem:[#allocation4] sm:$0xff] %v1707
      %1740 = vst [vmem:[#allocation4 + $0x8] sm:$0xff] %v1708
      %1741 = vst [vmem:[#allocation4 + $0x10] sm:$0xff] %v1709
      %1742 = vst [vmem:[#allocation4 + $0x18] sm:$0xff] %v1710
      %1743 = vst [vmem:[#allocation4 + $0x20] sm:$0xff] %v1711
      %1744 = vst [vmem:[#allocation4 + $0x28] sm:$0xff] %v1712
      %1745 = vst [vmem:[#allocation4 + $0x30] sm:$0xff] %v1713
      %1746 = vst [vmem:[#allocation4 + $0x38] sm:$0xff] %v1714
      %1747 = vst [vmem:[#allocation4 + $0x40] sm:$0xff] %v1715
      %1748 = vst [vmem:[#allocation4 + $0x48] sm:$0xff] %v1716
      %1749 = vst [vmem:[#allocation4 + $0x50] sm:$0xff] %v1717
      %1750 = vst [vmem:[#allocation4 + $0x58] sm:$0xff] %v1718
      %1751 = vst [vmem:[#allocation4 + $0x60] sm:$0xff] %v1719
      %1752 = vst [vmem:[#allocation4 + $0x68] sm:$0xff] %v1720
      %1753 = vst [vmem:[#allocation4 + $0x70] sm:$0xff] %v1721
      %1754 = vst [vmem:[#allocation4 + $0x78] sm:$0xff] %v1722
      %1755 = vst [vmem:[#allocation4 + $0x80] sm:$0xff] %v1723
      %1756 = vst [vmem:[#allocation4 + $0x88] sm:$0xff] %v1724
      %1757 = vst [vmem:[#allocation4 + $0x90] sm:$0xff] %v1725
      %1758 = vst [vmem:[#allocation4 + $0x98] sm:$0xff] %v1726
      %1759 = vst [vmem:[#allocation4 + $0xa0] sm:$0xff] %v1727
      %1760 = vst [vmem:[#allocation4 + $0xa8] sm:$0xff] %v1728
      %1761 = vst [vmem:[#allocation4 + $0xb0] sm:$0xff] %v1729
      %1762 = vst [vmem:[#allocation4 + $0xb8] sm:$0xff] %v1730
      %1763 = vst [vmem:[#allocation4 + $0xc0] sm:$0xff] %v1731
      %1764 = vst [vmem:[#allocation4 + $0xc8] sm:$0xff] %v1732
      %1765 = vst [vmem:[#allocation4 + $0xd0] sm:$0xff] %v1733
      %1766 = vst [vmem:[#allocation4 + $0xd8] sm:$0xff] %v1734
      %1767 = vst [vmem:[#allocation4 + $0xe0] sm:$0xff] %v1735
      %1768 = vst [vmem:[#allocation4 + $0xe8] sm:$0xff] %v1736
      %1769 = vst [vmem:[#allocation4 + $0xf0] sm:$0xff] %v1737
      %1770 = vst [vmem:[#allocation4 + $0xf8] sm:$0xff] %v1738
    $region25: #{tpu_custom_call.1} parent=1 // pred_fallthru
      _
    // Predicated region
    $region26: #{tpu_custom_call.1} parent=1 // pred_check
      _
    $region27: #{tpu_custom_call.1} parent=1 // pred_check_branch
      %1772 = sbr.rel (0) target = $region29
    $region28: #{tpu_custom_call.1} parent=1 // pred_region
      %s1774 = ssub.s32 4096, 4096
      %1775 = vsyncadd [#allocation5], %s1774
      %s1776 = sshll.u32 [#allocation4], 4
      %s1777 = int_to_ptr.vmem [resolvable:$true] %s1776
      %1782 = dma.vmem_to_hbm [thread:$0]  %s1777, 4096, %s4, [#allocation5], 256, 256, 16
    $region29: #{tpu_custom_call.1} parent=1 // pred_fallthru
      _
    // Predicated region
    $region30: #{tpu_custom_call.1} parent=1 // pred_check
      _
    $region31: #{tpu_custom_call.1} parent=1 // pred_check_branch
      %1784 = sbr.rel (0) target = $region33
    $region32: #{tpu_custom_call.1} parent=1 // pred_region
      %1785 = dma.done [#allocation5], 4096
    $region33: #{tpu_custom_call.1} parent=1 // pred_fallthru
      _
    %1786 = vsyncpa [#allocation5], 1

</llo_original>
